<compile_context>
chip_gen: v7x
topology: tpu7x:2x2x1
jax: 0.10.0
libtpu: 0.0.40
codegen_flags: <defaults>
</compile_context>

<pallas_src>
import functools

import jax
import jax.numpy as jnp
from jax.experimental import pallas as pl
from jax.experimental.pallas import tpu as pltpu

LN_EPS = 1e-5


def _round_up(a, b):
    return (a + b - 1) // b * b


def _cdiv(a, b):
    return -(-a // b)


def _tpu_generation():
    """Returns (mxu_tile, vmem_capacity_bytes) for the local TPU generation."""
    mxu, vmem = 128, 64 * 1024 * 1024          # conservative fallback
    kind = ""
    try:
        kind = jax.devices()[0].device_kind.lower()
    except Exception:
        pass
    if "v6" in kind or "v7" in kind:
        mxu = 256                              # 2x256x256 MXU
    if kind:
        vmem = 64 * 1024 * 1024 if "v7" in kind else 128 * 1024 * 1024
    try:                                       # prefer the real HW query
        vmem = int(pltpu.get_tpu_info().vmem_capacity_bytes)
    except Exception:
        pass
    return mxu, vmem


def _pick_h_tile(h_pad, f_pad, tm, w_bytes, x_bytes, budget, mxu):
    """Largest hidden-dim tile (128-multiple) whose working set fits VMEM."""
    fixed = (4 * tm * f_pad * x_bytes          # double-buffered x + out tiles
             + 3 * f_pad * 4                   # gamma / beta / b2
             + tm * f_pad * w_bytes            # relu(layer_norm(x)) scratch
             + tm * f_pad * 4)                 # f32 delta accumulator
    avail = budget - fixed
    # Per hidden column with resident (single-buffered) weights:
    per_col_res = 2 * f_pad * w_bytes + 4 + 8 * tm
    if avail >= h_pad * per_col_res:
        return h_pad                           # whole H resident in VMEM
    # Otherwise tile H; the weight slices get double-buffered by the pipeline.
    per_col_tiled = 2 * (2 * f_pad * w_bytes + 4) + 8 * tm
    th = max(avail, 0) // per_col_tiled
    th = max(128, (th // 128) * 128)
    if th >= mxu:                              # keep K/N blocks MXU-multiple
        th = (th // mxu) * mxu
    return int(min(th, h_pad))


def _ffn_kernel(x_ref, gamma_ref, beta_ref, w1_ref, b1_ref, w2_ref, b2_ref,
                o_ref, act_scr, acc_scr, *, feat_size):
    """One (row-tile, hidden-tile) grid step of the fused FFN.

    x_ref:     (tm, Fp)  input rows (Fp == F when F < 128, else padded)
    gamma_ref: (1, Fp)   LayerNorm scale (f32, zero-padded)
    beta_ref:  (1, Fp)   LayerNorm shift (f32, zero-padded)
    w1_ref:    (Fp, Th)  in_proj weight slice  [in, out], zero-padded
    b1_ref:    (1, Th)   in_proj bias slice (f32, zero-padded)
    w2_ref:    (Th, Fp)  out_proj weight slice [in, out], zero-padded
    b2_ref:    (1, Fp)   out_proj bias (f32, zero-padded)
    o_ref:     (tm, Fp)  output rows
    act_scr:   (tm, Fp)  relu(layer_norm(x)) held in the weight dtype
    acc_scr:   (tm, Fp)  f32 delta accumulator across hidden tiles
    """
    kh = pl.program_id(1)

    @pl.when(kh == 0)
    def _():
        x = x_ref[...].astype(jnp.float32)
        f_pad = x.shape[-1]
        inv_f = jnp.float32(1.0 / feat_size)
        # LayerNorm over the real channels only (padded columns are zero, so
        # sums are unaffected; centered values in padded columns are masked
        # before the variance).
        mean = jnp.sum(x, axis=-1, keepdims=True) * inv_f
        centered = x - mean
        if f_pad != feat_size:
            col = jax.lax.broadcasted_iota(jnp.int32, (1, f_pad), 1)
            centered = jnp.where(col < feat_size, centered, 0.0)
        var = jnp.sum(centered * centered, axis=-1, keepdims=True) * inv_f
        norm = centered * jax.lax.rsqrt(var + LN_EPS)
        norm = norm * gamma_ref[...] + beta_ref[...]
        act_scr[...] = jnp.maximum(norm, 0.0).astype(act_scr.dtype)
        acc_scr[...] = jnp.zeros_like(acc_scr)

    # in_proj slice -> ReLU -> out_proj slice, accumulated over hidden tiles.
    hidden = jnp.dot(act_scr[...], w1_ref[...],
                     preferred_element_type=jnp.float32)
    hidden = jnp.maximum(hidden + b1_ref[...], 0.0).astype(w2_ref.dtype)
    acc_scr[...] += jnp.dot(hidden, w2_ref[...],
                            preferred_element_type=jnp.float32)

    @pl.when(kh == pl.num_programs(1) - 1)
    def _():
        delta = acc_scr[...] + b2_ref[...]
        # Re-read x for the residual (no long f32 live range).
        o_ref[...] = (x_ref[...].astype(jnp.float32) + delta).astype(o_ref.dtype)


@functools.partial(jax.jit, static_argnames=("tm", "single_buffer"))
def ffn_batched(x, gamma, beta, w1, b1, w2, b2, *, tm=512, single_buffer=True):
    """Fused FFN on a single [num_features, feat_size] array."""
    n, f = x.shape
    h = w1.shape[1]
    x_bytes = jnp.dtype(x.dtype).itemsize
    w_bytes = jnp.dtype(w1.dtype).itemsize

    mxu, vmem_cap = _tpu_generation()
    vmem_limit = max(32 << 20, min((vmem_cap * 5) // 8, 96 << 20))
    budget = (vmem_limit * 3) // 5     # headroom for temps / internal scratch

    # Channel padding (MXU-aware). Never pad the activation path for F < 128:
    # full-array last-dim blocks avoid a 4x wrapper pad/slice HBM round trip.
    if f < 128:
        f_pad = f
    else:
        f_pad = _round_up(f, mxu if f >= mxu else 128)
    h_pad = _round_up(h, mxu if h >= mxu else 128)

    # Row tiling: VMEM-capped, and >= 2 steps when possible so the "parallel"
    # axis actually shards across v7x's two TensorCores.
    n_pad = _round_up(max(n, 8), 8)
    per_row = f_pad * (4 * x_bytes + w_bytes + 4)
    tm_vmem = max(8, ((budget // 2) // per_row) // 8 * 8)
    tm_mc = _round_up(_cdiv(n_pad, 2), 8) if n_pad > 8 else 8
    tm_eff = max(8, min(tm, tm_vmem, tm_mc))
    n_pad = _round_up(n_pad, tm_eff)
    num_rows = n_pad // tm_eff

    # Hidden-dim tiling (second, "arbitrary" grid axis) when H doesn't fit.
    th = _pick_h_tile(h_pad, f_pad, tm_eff, w_bytes, x_bytes, budget, mxu)
    h_pad = _round_up(h_pad, th)
    num_h = h_pad // th
    w_const = (num_h == 1)             # weight blocks constant across the grid

    # Host-side zero-padding (weights/scalars only unless F itself is padded).
    x_p = jnp.pad(x, ((0, n_pad - n), (0, f_pad - f)))
    gamma_p = jnp.pad(gamma.astype(jnp.float32).reshape(1, f),
                      ((0, 0), (0, f_pad - f)))
    beta_p = jnp.pad(beta.astype(jnp.float32).reshape(1, f),
                     ((0, 0), (0, f_pad - f)))
    w1_p = jnp.pad(w1, ((0, f_pad - f), (0, h_pad - h)))
    b1_p = jnp.pad(b1.astype(jnp.float32).reshape(1, h),
                   ((0, 0), (0, h_pad - h)))
    w2_p = jnp.pad(w2, ((0, h_pad - h), (0, f_pad - f)))
    b2_p = jnp.pad(b2.astype(jnp.float32).reshape(1, f),
                   ((0, 0), (0, f_pad - f)))

    def _spec(shape, imap, const):
        # Single-buffer blocks whose index never changes: no overlap to gain,
        # half the VMEM footprint.
        if const and single_buffer:
            return pl.BlockSpec(shape, imap, pipeline_mode=pl.Buffered(1))
        return pl.BlockSpec(shape, imap)

    kernel = functools.partial(_ffn_kernel, feat_size=f)

    cost = pl.CostEstimate(
        flops=4 * n_pad * f_pad * h_pad,
        transcendentals=n_pad,
        bytes_accessed=int(2 * n_pad * f_pad * x_bytes
                           + 2 * f_pad * h_pad * w_bytes
                           + (3 * f_pad + h_pad) * 4),
    )

    out_p = pl.pallas_call(
        kernel,
        out_shape=jax.ShapeDtypeStruct((n_pad, f_pad), x.dtype),
        grid_spec=pltpu.PrefetchScalarGridSpec(
            num_scalar_prefetch=0,
            grid=(num_rows, num_h),
            in_specs=[
                _spec((tm_eff, f_pad), lambda i, k: (i, 0), False),  # x tile
                _spec((1, f_pad), lambda i, k: (0, 0), True),        # gamma
                _spec((1, f_pad), lambda i, k: (0, 0), True),        # beta
                _spec((f_pad, th), lambda i, k: (0, k), w_const),    # w1 slice
                _spec((1, th), lambda i, k: (0, k), w_const),        # b1 slice
                _spec((th, f_pad), lambda i, k: (k, 0), w_const),    # w2 slice
                _spec((1, f_pad), lambda i, k: (0, 0), True),        # b2
            ],
            out_specs=pl.BlockSpec((tm_eff, f_pad), lambda i, k: (i, 0)),
            scratch_shapes=[
                pltpu.VMEM((tm_eff, f_pad), w1.dtype),      # relu(layer_norm)
                pltpu.VMEM((tm_eff, f_pad), jnp.float32),   # delta accumulator
            ],
        ),
        compiler_params=pltpu.CompilerParams(
            dimension_semantics=("parallel", "arbitrary"),
            vmem_limit_bytes=int(vmem_limit),
        ),
        cost_estimate=cost,
    )(x_p, gamma_p, beta_p, w1_p, b1_p, w2_p, b2_p)

    return out_p[:n, :f]


def ffn_forward(in_feat_list, params, *, tm=512, weights_dtype=None):
    """Mirrors FFN.forward: list in -> list out.  Single fused pallas_call."""
    gamma, beta, w1, b1, w2, b2 = params
    if not in_feat_list:
        return []
    if weights_dtype is not None:
        # bf16 is the MXU-native dtype on all generations; biases/LN stay f32.
        w1 = w1.astype(weights_dtype)
        w2 = w2.astype(weights_dtype)
    sizes = [int(x.shape[0]) for x in in_feat_list]
    x_all = (jnp.concatenate(in_feat_list, axis=0)
             if len(in_feat_list) > 1 else in_feat_list[0])
    try:
        out_all = ffn_batched(x_all, gamma, beta, w1, b1, w2, b2,
                              tm=tm, single_buffer=True)
    except Exception:
        # TODO(synk): drop this fallback once pl.Buffered(1) single-buffering
        # is guaranteed on every deployed jaxlib.
        out_all = ffn_batched(x_all, gamma, beta, w1, b1, w2, b2,
                              tm=tm, single_buffer=False)
    outs, off = [], 0
    for s in sizes:
        outs.append(out_all[off:off + s])
        off += s
    return outs


def init_params(key, feat_size, hidden_size, dtype=jnp.float32):
    """Deterministic synthetic parameters (shapes match the PyTorch module)."""
    k1, k2, k3, k4 = jax.random.split(key, 4)
    gamma = jnp.ones((1, feat_size), dtype)          # layer_norm.weight
    beta = jnp.zeros((1, feat_size), dtype)          # layer_norm.bias
    # nn.Linear(feat, hidden): torch weight (hidden, feat) -> stored (feat, hidden)
    w1 = (jax.random.normal(k1, (feat_size, hidden_size), dtype)
          * (1.0 / jnp.sqrt(feat_size)))
    b1 = (jax.random.normal(k2, (1, hidden_size), dtype) * 0.02)
    # nn.Linear(hidden, feat): torch weight (feat, hidden) -> stored (hidden, feat)
    w2 = (jax.random.normal(k3, (hidden_size, feat_size), dtype)
          * (1.0 / jnp.sqrt(hidden_size)))
    b2 = (jax.random.normal(k4, (1, feat_size), dtype) * 0.02)
    return gamma, beta, w1, b1, w2, b2


def ffn_reference(in_feat_list, params):
    """Pure-JAX reference mirroring the PyTorch forward."""
    gamma, beta, w1, b1, w2, b2 = params
    outs = []
    for x in in_feat_list:
        x32 = x.astype(jnp.float32)
        mean = jnp.mean(x32, axis=-1, keepdims=True)
        var = jnp.mean((x32 - mean) ** 2, axis=-1, keepdims=True)
        norm = (x32 - mean) / jnp.sqrt(var + LN_EPS) * gamma + beta
        hid = jnp.maximum(norm, 0.0) @ w1 + b1
        delta = jnp.maximum(hid, 0.0) @ w2 + b2
        outs.append((x32 + delta).astype(x.dtype))
    return outs


if __name__ == "__main__":
    feat_size = 32
    hidden_size = 64
    key = jax.random.PRNGKey(0)
    kp, ka, kb = jax.random.split(key, 3)

    params = init_params(kp, feat_size, hidden_size)

    # Two feature sets, like the module's in_feat_list.
    feats_a = jax.random.normal(ka, (16, feat_size), jnp.float32)
    feats_b = jax.random.normal(kb, (8, feat_size), jnp.float32)
    in_feat_list = [feats_a, feats_b]

    ref_list = ffn_reference(in_feat_list, params)

    # f32 path (matches the reference tightly).
    out_list = ffn_forward(in_feat_list, params)
    out_list = [jax.block_until_ready(o) for o in out_list]
    for o, r in zip(out_list, ref_list):
        assert o.shape == r.shape
        assert jnp.max(jnp.abs(o - r)) < 1e-4, "f32 mismatch vs reference"

    # bf16-weight fast path (MXU-native dtype); loose tolerance vs f32 ref.
    out_bf16 = ffn_forward(in_feat_list, params, weights_dtype=jnp.bfloat16)
    out_bf16 = [jax.block_until_ready(o) for o in out_bf16]
    for o, r in zip(out_bf16, ref_list):
        assert o.shape == r.shape
        assert jnp.max(jnp.abs(o - r)) < 0.25, "bf16 mismatch vs reference"

    print("KERNEL_OK")
</pallas_src>

<mosaic_0001>
module attributes {stable_mosaic.version = 11 : i64} {
  func.func @_ffn_kernel(%arg0: i32, %arg1: i32, %arg2: memref<16x32xf32, #tpu.memory_space<vmem>>, %arg3: memref<1x32xf32, #tpu.memory_space<vmem>>, %arg4: memref<1x32xf32, #tpu.memory_space<vmem>>, %arg5: memref<32x128xf32, #tpu.memory_space<vmem>>, %arg6: memref<1x128xf32, #tpu.memory_space<vmem>>, %arg7: memref<128x32xf32, #tpu.memory_space<vmem>>, %arg8: memref<1x32xf32, #tpu.memory_space<vmem>>, %arg9: memref<16x32xf32, #tpu.memory_space<vmem>>, %arg10: memref<16x32xf32, #tpu.memory_space<vmem>>, %arg11: memref<16x32xf32, #tpu.memory_space<vmem>>) attributes {dimension_semantics = [#tpu.dimension_semantics<parallel>, #tpu.dimension_semantics<arbitrary>], iteration_bounds = array<i64: 2, 1>, scalar_prefetch = 0 : i64, scratch_operands = 2 : i64, tpu.core_type = #tpu.core_type<tc>, window_params = [{transform_indices = @transform_0, window_bounds = array<i64: 16, 32>}, {pipeline_mode = #tpu.pipeline_mode<synchronous>, transform_indices = @transform_1, window_bounds = array<i64: 1, 32>}, {pipeline_mode = #tpu.pipeline_mode<synchronous>, transform_indices = @transform_2, window_bounds = array<i64: 1, 32>}, {pipeline_mode = #tpu.pipeline_mode<synchronous>, transform_indices = @transform_3, window_bounds = array<i64: 32, 128>}, {pipeline_mode = #tpu.pipeline_mode<synchronous>, transform_indices = @transform_4, window_bounds = array<i64: 1, 128>}, {pipeline_mode = #tpu.pipeline_mode<synchronous>, transform_indices = @transform_5, window_bounds = array<i64: 128, 32>}, {pipeline_mode = #tpu.pipeline_mode<synchronous>, transform_indices = @transform_6, window_bounds = array<i64: 1, 32>}, {transform_indices = @transform_7, window_bounds = array<i64: 16, 32>}]} {
    %c0_i32 = arith.constant 0 : i32
    %0 = arith.cmpi eq, %arg1, %c0_i32 : i32
    %1 = arith.extui %0 : i1 to i32
    %c0_i32_0 = arith.constant 0 : i32
    %2 = arith.cmpi ne, %1, %c0_i32_0 : i32
    scf.if %2 {
      %c0_16 = arith.constant 0 : index
      %c0_17 = arith.constant 0 : index
      %19 = vector.load %arg2[%c0_16, %c0_17] : memref<16x32xf32, #tpu.memory_space<vmem>>, vector<16x32xf32>
      %cst_18 = arith.constant dense<0.000000e+00> : vector<16xf32>
      %20 = vector.multi_reduction <add>, %19, %cst_18 [1] : vector<16x32xf32> to vector<16xf32>
      %21 = vector.shape_cast %20 : vector<16xf32> to vector<16x1xf32>
      %cst_19 = arith.constant 3.125000e-02 : f32
      %22 = vector.broadcast %cst_19 : f32 to vector<16x1xf32>
      %23 = arith.mulf %21, %22 : vector<16x1xf32>
      %24 = vector.broadcast %23 : vector<16x1xf32> to vector<16x32xf32>
      %25 = arith.subf %19, %24 : vector<16x32xf32>
      %26 = arith.mulf %25, %25 : vector<16x32xf32>
      %cst_20 = arith.constant dense<0.000000e+00> : vector<16xf32>
      %27 = vector.multi_reduction <add>, %26, %cst_20 [1] : vector<16x32xf32> to vector<16xf32>
      %28 = vector.shape_cast %27 : vector<16xf32> to vector<16x1xf32>
      %cst_21 = arith.constant 3.125000e-02 : f32
      %29 = vector.broadcast %cst_21 : f32 to vector<16x1xf32>
      %30 = arith.mulf %28, %29 : vector<16x1xf32>
      %cst_22 = arith.constant 9.99999974E-6 : f32
      %31 = vector.broadcast %cst_22 : f32 to vector<16x1xf32>
      %32 = arith.addf %30, %31 : vector<16x1xf32>
      %33 = math.rsqrt %32 : vector<16x1xf32>
      %34 = vector.broadcast %33 : vector<16x1xf32> to vector<16x32xf32>
      %35 = arith.mulf %25, %34 : vector<16x32xf32>
      %c0_23 = arith.constant 0 : index
      %c0_24 = arith.constant 0 : index
      %36 = vector.load %arg3[%c0_23, %c0_24] : memref<1x32xf32, #tpu.memory_space<vmem>>, vector<1x32xf32>
      %37 = vector.broadcast %36 : vector<1x32xf32> to vector<16x32xf32>
      %38 = arith.mulf %35, %37 : vector<16x32xf32>
      %c0_25 = arith.constant 0 : index
      %c0_26 = arith.constant 0 : index
      %39 = vector.load %arg4[%c0_25, %c0_26] : memref<1x32xf32, #tpu.memory_space<vmem>>, vector<1x32xf32>
      %40 = vector.broadcast %39 : vector<1x32xf32> to vector<16x32xf32>
      %41 = arith.addf %38, %40 : vector<16x32xf32>
      %cst_27 = arith.constant 0.000000e+00 : f32
      %42 = vector.broadcast %cst_27 : f32 to vector<16x32xf32>
      %43 = arith.maximumf %41, %42 : vector<16x32xf32>
      %c0_28 = arith.constant 0 : index
      %c0_29 = arith.constant 0 : index
      %44 = vector.load %arg10[%c0_28, %c0_29] : memref<16x32xf32, #tpu.memory_space<vmem>>, vector<16x32xf32>
      tpu.vector_store %arg10[%c0_28, %c0_29], %43 {strides = array<i32>} : memref<16x32xf32, #tpu.memory_space<vmem>>, vector<16x32xf32>,
      %cst_30 = arith.constant 0.000000e+00 : f32
      %45 = vector.broadcast %cst_30 : f32 to vector<16x32xf32>
      %c0_31 = arith.constant 0 : index
      %c0_32 = arith.constant 0 : index
      %46 = vector.load %arg11[%c0_31, %c0_32] : memref<16x32xf32, #tpu.memory_space<vmem>>, vector<16x32xf32>
      tpu.vector_store %arg11[%c0_31, %c0_32], %45 {strides = array<i32>} : memref<16x32xf32, #tpu.memory_space<vmem>>, vector<16x32xf32>,
    } else {
    }
    %c0 = arith.constant 0 : index
    %c0_1 = arith.constant 0 : index
    %3 = vector.load %arg10[%c0, %c0_1] : memref<16x32xf32, #tpu.memory_space<vmem>>, vector<16x32xf32>
    %c0_2 = arith.constant 0 : index
    %c0_3 = arith.constant 0 : index
    %4 = vector.load %arg5[%c0_2, %c0_3] : memref<32x128xf32, #tpu.memory_space<vmem>>, vector<32x128xf32>
    %cst = arith.constant dense<0.000000e+00> : vector<16x128xf32>
    %5 = tpu.matmul %3, %4, %cst {dimension_numbers = #tpu.dot_dimension_numbers<[1], [0], [0], [1], [0, 0, 1, 1], [], []>} : vector<16x32xf32>, vector<32x128xf32>, vector<16x128xf32> -> vector<16x128xf32>
    %c0_4 = arith.constant 0 : index
    %c0_5 = arith.constant 0 : index
    %6 = vector.load %arg6[%c0_4, %c0_5] : memref<1x128xf32, #tpu.memory_space<vmem>>, vector<1x128xf32>
    %7 = vector.broadcast %6 : vector<1x128xf32> to vector<16x128xf32>
    %8 = arith.addf %5, %7 : vector<16x128xf32>
    %cst_6 = arith.constant 0.000000e+00 : f32
    %9 = vector.broadcast %cst_6 : f32 to vector<16x128xf32>
    %10 = arith.maximumf %8, %9 : vector<16x128xf32>
    %c0_7 = arith.constant 0 : index
    %c0_8 = arith.constant 0 : index
    %11 = vector.load %arg11[%c0_7, %c0_8] : memref<16x32xf32, #tpu.memory_space<vmem>>, vector<16x32xf32>
    %c0_9 = arith.constant 0 : index
    %c0_10 = arith.constant 0 : index
    %12 = vector.load %arg7[%c0_9, %c0_10] : memref<128x32xf32, #tpu.memory_space<vmem>>, vector<128x32xf32>
    %cst_11 = arith.constant dense<0.000000e+00> : vector<16x32xf32>
    %13 = tpu.matmul %10, %12, %cst_11 {dimension_numbers = #tpu.dot_dimension_numbers<[1], [0], [0], [1], [0, 0, 1, 1], [], []>} : vector<16x128xf32>, vector<128x32xf32>, vector<16x32xf32> -> vector<16x32xf32>
    %14 = arith.addf %11, %13 : vector<16x32xf32>
    %c0_12 = arith.constant 0 : index
    %c0_13 = arith.constant 0 : index
    %15 = vector.load %arg11[%c0_12, %c0_13] : memref<16x32xf32, #tpu.memory_space<vmem>>, vector<16x32xf32>
    tpu.vector_store %arg11[%c0_12, %c0_13], %14 {strides = array<i32>} : memref<16x32xf32, #tpu.memory_space<vmem>>, vector<16x32xf32>,
    %c0_i32_14 = arith.constant 0 : i32
    %16 = arith.cmpi eq, %arg1, %c0_i32_14 : i32
    %17 = arith.extui %16 : i1 to i32
    %c0_i32_15 = arith.constant 0 : i32
    %18 = arith.cmpi ne, %17, %c0_i32_15 : i32
    scf.if %18 {
      %c0_16 = arith.constant 0 : index
      %c0_17 = arith.constant 0 : index
      %19 = vector.load %arg11[%c0_16, %c0_17] : memref<16x32xf32, #tpu.memory_space<vmem>>, vector<16x32xf32>
      %c0_18 = arith.constant 0 : index
      %c0_19 = arith.constant 0 : index
      %20 = vector.load %arg8[%c0_18, %c0_19] : memref<1x32xf32, #tpu.memory_space<vmem>>, vector<1x32xf32>
      %21 = vector.broadcast %20 : vector<1x32xf32> to vector<16x32xf32>
      %22 = arith.addf %19, %21 : vector<16x32xf32>
      %c0_20 = arith.constant 0 : index
      %c0_21 = arith.constant 0 : index
      %23 = vector.load %arg2[%c0_20, %c0_21] : memref<16x32xf32, #tpu.memory_space<vmem>>, vector<16x32xf32>
      %24 = arith.addf %23, %22 : vector<16x32xf32>
      %c0_22 = arith.constant 0 : index
      %c0_23 = arith.constant 0 : index
      %25 = vector.load %arg9[%c0_22, %c0_23] : memref<16x32xf32, #tpu.memory_space<vmem>>, vector<16x32xf32>
      tpu.vector_store %arg9[%c0_22, %c0_23], %24 {strides = array<i32>} : memref<16x32xf32, #tpu.memory_space<vmem>>, vector<16x32xf32>,
    } else {
    }
    return
  }
  func.func @transform_0(%arg0: i32, %arg1: i32) -> (i32, i32) {
    %c0_i32 = arith.constant 0 : i32
    %c0_i32_0 = arith.constant 0 : i32
    return %arg0, %c0_i32 : i32, i32
  }
  func.func @transform_1(%arg0: i32, %arg1: i32) -> (i32, i32) {
    %c0_i32 = arith.constant 0 : i32
    %c0_i32_0 = arith.constant 0 : i32
    %c0_i32_1 = arith.constant 0 : i32
    return %c0_i32, %c0_i32_0 : i32, i32
  }
  func.func @transform_2(%arg0: i32, %arg1: i32) -> (i32, i32) {
    %c0_i32 = arith.constant 0 : i32
    %c0_i32_0 = arith.constant 0 : i32
    %c0_i32_1 = arith.constant 0 : i32
    return %c0_i32, %c0_i32_0 : i32, i32
  }
  func.func @transform_3(%arg0: i32, %arg1: i32) -> (i32, i32) {
    %c0_i32 = arith.constant 0 : i32
    %c0_i32_0 = arith.constant 0 : i32
    return %c0_i32, %arg1 : i32, i32
  }
  func.func @transform_4(%arg0: i32, %arg1: i32) -> (i32, i32) {
    %c0_i32 = arith.constant 0 : i32
    %c0_i32_0 = arith.constant 0 : i32
    return %c0_i32, %arg1 : i32, i32
  }
  func.func @transform_5(%arg0: i32, %arg1: i32) -> (i32, i32) {
    %c0_i32 = arith.constant 0 : i32
    %c0_i32_0 = arith.constant 0 : i32
    return %arg1, %c0_i32 : i32, i32
  }
  func.func @transform_6(%arg0: i32, %arg1: i32) -> (i32, i32) {
    %c0_i32 = arith.constant 0 : i32
    %c0_i32_0 = arith.constant 0 : i32
    %c0_i32_1 = arith.constant 0 : i32
    return %c0_i32, %c0_i32_0 : i32, i32
  }
  func.func @transform_7(%arg0: i32, %arg1: i32) -> (i32, i32) {
    %c0_i32 = arith.constant 0 : i32
    %c0_i32_0 = arith.constant 0 : i32
    return %arg0, %c0_i32 : i32, i32
  }
}

module attributes {stable_mosaic.version = 11 : i64} {
  func.func @_ffn_kernel(%arg0: i32, %arg1: i32, %arg2: memref<16x32xf32, #tpu.memory_space<vmem>>, %arg3: memref<1x32xf32, #tpu.memory_space<vmem>>, %arg4: memref<1x32xf32, #tpu.memory_space<vmem>>, %arg5: memref<32x128xf32, #tpu.memory_space<vmem>>, %arg6: memref<1x128xf32, #tpu.memory_space<vmem>>, %arg7: memref<128x32xf32, #tpu.memory_space<vmem>>, %arg8: memref<1x32xf32, #tpu.memory_space<vmem>>, %arg9: memref<16x32xf32, #tpu.memory_space<vmem>>, %arg10: memref<16x32xf32, #tpu.memory_space<vmem>>, %arg11: memref<16x32xf32, #tpu.memory_space<vmem>>) attributes {dimension_semantics = [#tpu.dimension_semantics<parallel>, #tpu.dimension_semantics<arbitrary>], iteration_bounds = array<i64: 2, 1>, scalar_prefetch = 0 : i64, scratch_operands = 2 : i64, tpu.core_type = #tpu.core_type<tc>, window_params = [{transform_indices = @transform_0, window_bounds = array<i64: 16, 32>}, {pipeline_mode = #tpu.pipeline_mode<synchronous>, transform_indices = @transform_1, window_bounds = array<i64: 1, 32>}, {pipeline_mode = #tpu.pipeline_mode<synchronous>, transform_indices = @transform_2, window_bounds = array<i64: 1, 32>}, {transform_indices = @transform_3, window_bounds = array<i64: 32, 128>}, {transform_indices = @transform_4, window_bounds = array<i64: 1, 128>}, {transform_indices = @transform_5, window_bounds = array<i64: 128, 32>}, {pipeline_mode = #tpu.pipeline_mode<synchronous>, transform_indices = @transform_6, window_bounds = array<i64: 1, 32>}, {transform_indices = @transform_7, window_bounds = array<i64: 16, 32>}]} {
    %c0_i32 = arith.constant 0 : i32
    %0 = arith.cmpi eq, %arg1, %c0_i32 : i32
    %1 = arith.extui %0 : i1 to i32
    %c0_i32_0 = arith.constant 0 : i32
    %2 = arith.cmpi ne, %1, %c0_i32_0 : i32
    scf.if %2 {
      %c0_16 = arith.constant 0 : index
      %c0_17 = arith.constant 0 : index
      %19 = vector.load %arg2[%c0_16, %c0_17] : memref<16x32xf32, #tpu.memory_space<vmem>>, vector<16x32xf32>
      %cst_18 = arith.constant dense<0.000000e+00> : vector<16xf32>
      %20 = vector.multi_reduction <add>, %19, %cst_18 [1] : vector<16x32xf32> to vector<16xf32>
      %21 = vector.shape_cast %20 : vector<16xf32> to vector<16x1xf32>
      %cst_19 = arith.constant 3.125000e-02 : f32
      %22 = vector.broadcast %cst_19 : f32 to vector<16x1xf32>
      %23 = arith.mulf %21, %22 : vector<16x1xf32>
      %24 = vector.broadcast %23 : vector<16x1xf32> to vector<16x32xf32>
      %25 = arith.subf %19, %24 : vector<16x32xf32>
      %26 = arith.mulf %25, %25 : vector<16x32xf32>
      %cst_20 = arith.constant dense<0.000000e+00> : vector<16xf32>
      %27 = vector.multi_reduction <add>, %26, %cst_20 [1] : vector<16x32xf32> to vector<16xf32>
      %28 = vector.shape_cast %27 : vector<16xf32> to vector<16x1xf32>
      %cst_21 = arith.constant 3.125000e-02 : f32
      %29 = vector.broadcast %cst_21 : f32 to vector<16x1xf32>
      %30 = arith.mulf %28, %29 : vector<16x1xf32>
      %cst_22 = arith.constant 9.99999974E-6 : f32
      %31 = vector.broadcast %cst_22 : f32 to vector<16x1xf32>
      %32 = arith.addf %30, %31 : vector<16x1xf32>
      %33 = math.rsqrt %32 : vector<16x1xf32>
      %34 = vector.broadcast %33 : vector<16x1xf32> to vector<16x32xf32>
      %35 = arith.mulf %25, %34 : vector<16x32xf32>
      %c0_23 = arith.constant 0 : index
      %c0_24 = arith.constant 0 : index
      %36 = vector.load %arg3[%c0_23, %c0_24] : memref<1x32xf32, #tpu.memory_space<vmem>>, vector<1x32xf32>
      %37 = vector.broadcast %36 : vector<1x32xf32> to vector<16x32xf32>
      %38 = arith.mulf %35, %37 : vector<16x32xf32>
      %c0_25 = arith.constant 0 : index
      %c0_26 = arith.constant 0 : index
      %39 = vector.load %arg4[%c0_25, %c0_26] : memref<1x32xf32, #tpu.memory_space<vmem>>, vector<1x32xf32>
      %40 = vector.broadcast %39 : vector<1x32xf32> to vector<16x32xf32>
      %41 = arith.addf %38, %40 : vector<16x32xf32>
      %cst_27 = arith.constant 0.000000e+00 : f32
      %42 = vector.broadcast %cst_27 : f32 to vector<16x32xf32>
      %43 = arith.maximumf %41, %42 : vector<16x32xf32>
      %c0_28 = arith.constant 0 : index
      %c0_29 = arith.constant 0 : index
      %44 = vector.load %arg10[%c0_28, %c0_29] : memref<16x32xf32, #tpu.memory_space<vmem>>, vector<16x32xf32>
      tpu.vector_store %arg10[%c0_28, %c0_29], %43 {strides = array<i32>} : memref<16x32xf32, #tpu.memory_space<vmem>>, vector<16x32xf32>,
      %cst_30 = arith.constant 0.000000e+00 : f32
      %45 = vector.broadcast %cst_30 : f32 to vector<16x32xf32>
      %c0_31 = arith.constant 0 : index
      %c0_32 = arith.constant 0 : index
      %46 = vector.load %arg11[%c0_31, %c0_32] : memref<16x32xf32, #tpu.memory_space<vmem>>, vector<16x32xf32>
      tpu.vector_store %arg11[%c0_31, %c0_32], %45 {strides = array<i32>} : memref<16x32xf32, #tpu.memory_space<vmem>>, vector<16x32xf32>,
    } else {
    }
    %c0 = arith.constant 0 : index
    %c0_1 = arith.constant 0 : index
    %3 = vector.load %arg10[%c0, %c0_1] : memref<16x32xf32, #tpu.memory_space<vmem>>, vector<16x32xf32>
    %c0_2 = arith.constant 0 : index
    %c0_3 = arith.constant 0 : index
    %4 = vector.load %arg5[%c0_2, %c0_3] : memref<32x128xf32, #tpu.memory_space<vmem>>, vector<32x128xf32>
    %cst = arith.constant dense<0.000000e+00> : vector<16x128xf32>
    %5 = tpu.matmul %3, %4, %cst {dimension_numbers = #tpu.dot_dimension_numbers<[1], [0], [0], [1], [0, 0, 1, 1], [], []>} : vector<16x32xf32>, vector<32x128xf32>, vector<16x128xf32> -> vector<16x128xf32>
    %c0_4 = arith.constant 0 : index
    %c0_5 = arith.constant 0 : index
    %6 = vector.load %arg6[%c0_4, %c0_5] : memref<1x128xf32, #tpu.memory_space<vmem>>, vector<1x128xf32>
    %7 = vector.broadcast %6 : vector<1x128xf32> to vector<16x128xf32>
    %8 = arith.addf %5, %7 : vector<16x128xf32>
    %cst_6 = arith.constant 0.000000e+00 : f32
    %9 = vector.broadcast %cst_6 : f32 to vector<16x128xf32>
    %10 = arith.maximumf %8, %9 : vector<16x128xf32>
    %c0_7 = arith.constant 0 : index
    %c0_8 = arith.constant 0 : index
    %11 = vector.load %arg11[%c0_7, %c0_8] : memref<16x32xf32, #tpu.memory_space<vmem>>, vector<16x32xf32>
    %c0_9 = arith.constant 0 : index
    %c0_10 = arith.constant 0 : index
    %12 = vector.load %arg7[%c0_9, %c0_10] : memref<128x32xf32, #tpu.memory_space<vmem>>, vector<128x32xf32>
    %cst_11 = arith.constant dense<0.000000e+00> : vector<16x32xf32>
    %13 = tpu.matmul %10, %12, %cst_11 {dimension_numbers = #tpu.dot_dimension_numbers<[1], [0], [0], [1], [0, 0, 1, 1], [], []>} : vector<16x128xf32>, vector<128x32xf32>, vector<16x32xf32> -> vector<16x32xf32>
    %14 = arith.addf %11, %13 : vector<16x32xf32>
    %c0_12 = arith.constant 0 : index
    %c0_13 = arith.constant 0 : index
    %15 = vector.load %arg11[%c0_12, %c0_13] : memref<16x32xf32, #tpu.memory_space<vmem>>, vector<16x32xf32>
    tpu.vector_store %arg11[%c0_12, %c0_13], %14 {strides = array<i32>} : memref<16x32xf32, #tpu.memory_space<vmem>>, vector<16x32xf32>,
    %c0_i32_14 = arith.constant 0 : i32
    %16 = arith.cmpi eq, %arg1, %c0_i32_14 : i32
    %17 = arith.extui %16 : i1 to i32
    %c0_i32_15 = arith.constant 0 : i32
    %18 = arith.cmpi ne, %17, %c0_i32_15 : i32
    scf.if %18 {
      %c0_16 = arith.constant 0 : index
      %c0_17 = arith.constant 0 : index
      %19 = vector.load %arg11[%c0_16, %c0_17] : memref<16x32xf32, #tpu.memory_space<vmem>>, vector<16x32xf32>
      %c0_18 = arith.constant 0 : index
      %c0_19 = arith.constant 0 : index
      %20 = vector.load %arg8[%c0_18, %c0_19] : memref<1x32xf32, #tpu.memory_space<vmem>>, vector<1x32xf32>
      %21 = vector.broadcast %20 : vector<1x32xf32> to vector<16x32xf32>
      %22 = arith.addf %19, %21 : vector<16x32xf32>
      %c0_20 = arith.constant 0 : index
      %c0_21 = arith.constant 0 : index
      %23 = vector.load %arg2[%c0_20, %c0_21] : memref<16x32xf32, #tpu.memory_space<vmem>>, vector<16x32xf32>
      %24 = arith.addf %23, %22 : vector<16x32xf32>
      %c0_22 = arith.constant 0 : index
      %c0_23 = arith.constant 0 : index
      %25 = vector.load %arg9[%c0_22, %c0_23] : memref<16x32xf32, #tpu.memory_space<vmem>>, vector<16x32xf32>
      tpu.vector_store %arg9[%c0_22, %c0_23], %24 {strides = array<i32>} : memref<16x32xf32, #tpu.memory_space<vmem>>, vector<16x32xf32>,
    } else {
    }
    return
  }
  func.func @transform_0(%arg0: i32, %arg1: i32) -> (i32, i32) {
    %c0_i32 = arith.constant 0 : i32
    %c0_i32_0 = arith.constant 0 : i32
    return %arg0, %c0_i32 : i32, i32
  }
  func.func @transform_1(%arg0: i32, %arg1: i32) -> (i32, i32) {
    %c0_i32 = arith.constant 0 : i32
    %c0_i32_0 = arith.constant 0 : i32
    %c0_i32_1 = arith.constant 0 : i32
    return %c0_i32, %c0_i32_0 : i32, i32
  }
  func.func @transform_2(%arg0: i32, %arg1: i32) -> (i32, i32) {
    %c0_i32 = arith.constant 0 : i32
    %c0_i32_0 = arith.constant 0 : i32
    %c0_i32_1 = arith.constant 0 : i32
    return %c0_i32, %c0_i32_0 : i32, i32
  }
  func.func @transform_3(%arg0: i32, %arg1: i32) -> (i32, i32) {
    %c0_i32 = arith.constant 0 : i32
    %c0_i32_0 = arith.constant 0 : i32
    return %c0_i32, %arg1 : i32, i32
  }
  func.func @transform_4(%arg0: i32, %arg1: i32) -> (i32, i32) {
    %c0_i32 = arith.constant 0 : i32
    %c0_i32_0 = arith.constant 0 : i32
    return %c0_i32, %arg1 : i32, i32
  }
  func.func @transform_5(%arg0: i32, %arg1: i32) -> (i32, i32) {
    %c0_i32 = arith.constant 0 : i32
    %c0_i32_0 = arith.constant 0 : i32
    return %arg1, %c0_i32 : i32, i32
  }
  func.func @transform_6(%arg0: i32, %arg1: i32) -> (i32, i32) {
    %c0_i32 = arith.constant 0 : i32
    %c0_i32_0 = arith.constant 0 : i32
    %c0_i32_1 = arith.constant 0 : i32
    return %c0_i32, %c0_i32_0 : i32, i32
  }
  func.func @transform_7(%arg0: i32, %arg1: i32) -> (i32, i32) {
    %c0_i32 = arith.constant 0 : i32
    %c0_i32_0 = arith.constant 0 : i32
    return %arg0, %c0_i32 : i32, i32
  }
}

</mosaic_0001>

<llo_original>
// kernel: ffn_batched.1
$region0: #{ffn_batched.1}
  #allocation0 [shape = 'u32[]', space=smem, size = 0x4, offset = 0x4, fixed_abs, tag = 'smem constant byte address 0x4 - core index']
  #allocation1 [shape = 'u32[144,128]{1,0:T(1,128)}', space=vmem, size = 0x12000, scoped, tag = 'internal scratch']
  #allocation2 [shape = 'f32[16,32]{1,0:T(8,128)}', space=vmem, size = 0x2000, scoped, tag = 'scratch operand']
  #allocation3 [shape = 'f32[16,32]{1,0:T(8,128)}', space=vmem, size = 0x2000, scoped, tag = 'scratch operand']
  %s0 = inlined_call_operand.hbm [shape: f32[32,32], index: 0, kind: input, shape index: {}]
  %s1 = inlined_call_operand.hbm [shape: f32[1,32], index: 1, kind: input, shape index: {}]
  %s2 = inlined_call_operand.hbm [shape: f32[1,32], index: 2, kind: input, shape index: {}]
  %s3 = inlined_call_operand.hbm [shape: f32[32,128], index: 3, kind: input, shape index: {}]
  %s4 = inlined_call_operand.hbm [shape: f32[1,128], index: 4, kind: input, shape index: {}]
  %s5 = inlined_call_operand.hbm [shape: f32[128,32], index: 5, kind: input, shape index: {}]
  %s6 = inlined_call_operand.hbm [shape: f32[1,32], index: 6, kind: input, shape index: {}]
  %s7 = inlined_call_operand.hbm [shape: f32[32,32], index: 7, kind: output, shape index: {}]
  %s8 = sld [smem:[#allocation0]]
  $region97: #{ffn_batched.1} parent=0
    _
  %s10 = ssub.s32 1, %s8
  %s11 = scalar_select 0, %s10, %s8
  $region1: #{ffn_batched.1} parent=0
    #allocation4 [shape = 'u8[16384]{0}', space=vmem, size = 0x4000, scoped, tag = 'input window, operand 0']
    #allocation5 [shape = 's32[2]{0}', space=sflag, size = 0x8, scoped, tag = 'scoped memory for ffn_batched.1']
    #allocation6 [shape = 's32[2]{0}', space=sflag, size = 0x8, scoped, tag = 'scoped memory for ffn_batched.1']
    #allocation7 [shape = 'u8[512]{0}', space=vmem, size = 0x400, scoped, tag = 'input window, operand 1, single buffered']
    #allocation8 [shape = 's32[1]{0}', space=sflag, size = 0x4, scoped, tag = 'scoped memory for ffn_batched.1']
    #allocation9 [shape = 'u8[512]{0}', space=vmem, size = 0x400, scoped, tag = 'input window, operand 2, single buffered']
    #allocation10 [shape = 'u8[16384]{0}', space=vmem, size = 0x4000, scoped, tag = 'input window, operand 3, single buffered']
    #allocation11 [shape = 's32[1]{0}', space=sflag, size = 0x4, scoped, tag = 'scoped memory for ffn_batched.1']
    #allocation12 [shape = 'u8[512]{0}', space=vmem, size = 0x400, scoped, tag = 'input window, operand 4, single buffered']
    #allocation13 [shape = 'u8[65536]{0}', space=vmem, size = 0x10000, scoped, tag = 'input window, operand 5, single buffered']
    #allocation14 [shape = 's32[1]{0}', space=sflag, size = 0x4, scoped, tag = 'scoped memory for ffn_batched.1']
    #allocation15 [shape = 'u8[512]{0}', space=vmem, size = 0x400, scoped, tag = 'input window, operand 6, single buffered']
    #allocation16 [shape = 'u8[16384]{0}', space=vmem, size = 0x4000, scoped, tag = 'output window, operand 0']
    %12 = vsyncpa [#allocation5], 0
    %s13 = scalar_lea.sflag [#allocation5], 1
    %14 = vsyncpa %s13, 0
    %15 = vsyncpa [#allocation8], 0
    %16 = vsyncpa [#allocation11], 0
    %17 = vsyncpa [#allocation14], 0
    %18 = vsyncpa [#allocation6], 0
    %s19 = scalar_lea.sflag [#allocation6], 1
    %20 = vsyncpa %s19, 0
    loop: start=0, step=1, limit=4
    $region2: #{ffn_batched.1} parent=1 // loop_pre_header
      _
    $region3: #{ffn_batched.1} parent=1 // loop_header
      %s22 = sphi 0, %s26
      %p23 = scmp.ge.s32.totalorder %s22, 4
      %s29 = sphi 0, %s41
      %s30 = sphi 0, %s37
      %s31 = sphi 0, %s29
      %s32 = sphi 0, %s30
      %s33 = sphi 0, %s31
      %s34 = sphi 0, %s32
      %s44 = sphi 0, %s46
      %s47 = sphi 0, %s44
      %s48 = sphi 0, %s47
      %s64 = sphi 0, %s48
      %s68 = sphi 0, %s68
      %s70 = sphi 0, %s68
      %s71 = sphi 0, %s70
      %s85 = sphi 0, %s71
      %s89 = sphi 0, %s89
      %s91 = sphi 0, %s89
      %s92 = sphi 0, %s91
      %s106 = sphi 0, %s92
      %s112 = sphi 0, %s114
      %s115 = sphi 0, %s112
      %s116 = sphi 0, %s115
      %s132 = sphi 0, %s116
      %s138 = sphi 0, %s140
      %s141 = sphi 0, %s138
      %s142 = sphi 0, %s141
      %s158 = sphi 0, %s142
      %s164 = sphi 0, %s166
      %s167 = sphi 0, %s164
      %s168 = sphi 0, %s167
      %s184 = sphi 0, %s168
      %s188 = sphi 0, %s188
      %s190 = sphi 0, %s188
      %s191 = sphi 0, %s190
      %s205 = sphi 0, %s191
      %s211 = sphi 0, %s213
      %s214 = sphi 0, %s211
      %s215 = sphi 0, %s214
      %s231 = sphi 0, %s215
    $region4: #{ffn_batched.1} parent=1 // loop_header_branch
      %25 = sbr.rel (%p23) target = $region8
    $region5: #{ffn_batched.1} parent=1 // loop_body
      %s27 = ssub.s32 %s22, 1
      %s28 = ssub.s32 %s22, 2
      %s35 = sadd.s32 1, %s30
      %p36 = scmp.ge.s32.totalorder %s35, 1
      %s37 = scalar_select %p36, 0, %s35
      %s38 = sadd.s32 1, %s29
      %s39 = scalar_select %p36, %s38, %s29
      %p40 = scmp.ge.s32.totalorder %s39, 2
      %s41 = scalar_select %p40, 0, %s39
      %s42 = ssub.s32 %s29, %s41
      %p43 = scmp.eq.s32.totalorder %s42, 0
      %s45 = sadd.s32 %s44, 1
      %s46 = scalar_select %p43, %s44, %s45
      %p49 = pneg %p43
      %p50 = scmp.eq.s32.totalorder %s22, 1
      %p51 = por %p49, %p50
      %p52 = scmp.ne.s32.totalorder %s44, %s47
      %p53 = scmp.eq.s32.totalorder %s22, 0
      %p54 = por %p52, %p53
      %p55 = scmp.ne.s32.totalorder %s44, %s47
      %p56 = scmp.eq.s32.totalorder %s27, 1
      %p57 = por %p55, %p56
      %p58 = scmp.ne.s32.totalorder %s47, %s48
      %p59 = scmp.eq.s32.totalorder %s27, 0
      %p60 = por %p58, %p59
      %p61 = scmp.ne.s32.totalorder %s47, %s48
      %p62 = scmp.eq.s32.totalorder %s28, 1
      %p63 = por %p61, %p62
      %p65 = scmp.ne.s32.totalorder %s48, %s64
      %p66 = scmp.eq.s32.totalorder %s28, 0
      %p67 = por %p65, %p66
      %s69 = sadd.s32 %s68, 1
      %p72 = scmp.eq.s32.totalorder %s22, 1
      %p73 = scmp.ne.s32.totalorder %s68, %s70
      %p74 = scmp.eq.s32.totalorder %s22, 0
      %p75 = por %p73, %p74
      %p76 = scmp.ne.s32.totalorder %s68, %s70
      %p77 = scmp.eq.s32.totalorder %s27, 1
      %p78 = por %p76, %p77
      %p79 = scmp.ne.s32.totalorder %s70, %s71
      %p80 = scmp.eq.s32.totalorder %s27, 0
      %p81 = por %p79, %p80
      %p82 = scmp.ne.s32.totalorder %s70, %s71
      %p83 = scmp.eq.s32.totalorder %s28, 1
      %p84 = por %p82, %p83
      %p86 = scmp.ne.s32.totalorder %s71, %s85
      %p87 = scmp.eq.s32.totalorder %s28, 0
      %p88 = por %p86, %p87
      %s90 = sadd.s32 %s89, 1
      %p93 = scmp.eq.s32.totalorder %s22, 1
      %p94 = scmp.ne.s32.totalorder %s89, %s91
      %p95 = scmp.eq.s32.totalorder %s22, 0
      %p96 = por %p94, %p95
      %p97 = scmp.ne.s32.totalorder %s89, %s91
      %p98 = scmp.eq.s32.totalorder %s27, 1
      %p99 = por %p97, %p98
      %p100 = scmp.ne.s32.totalorder %s91, %s92
      %p101 = scmp.eq.s32.totalorder %s27, 0
      %p102 = por %p100, %p101
      %p103 = scmp.ne.s32.totalorder %s91, %s92
      %p104 = scmp.eq.s32.totalorder %s28, 1
      %p105 = por %p103, %p104
      %p107 = scmp.ne.s32.totalorder %s92, %s106
      %p108 = scmp.eq.s32.totalorder %s28, 0
      %p109 = por %p107, %p108
      %s110 = ssub.s32 %s30, %s37
      %p111 = scmp.eq.s32.totalorder %s110, 0
      %s113 = sadd.s32 %s112, 1
      %s114 = scalar_select %p111, %s112, %s113
      %p117 = pneg %p111
      %p118 = scmp.eq.s32.totalorder %s22, 1
      %p119 = por %p117, %p118
      %p120 = scmp.ne.s32.totalorder %s112, %s115
      %p121 = scmp.eq.s32.totalorder %s22, 0
      %p122 = por %p120, %p121
      %p123 = scmp.ne.s32.totalorder %s112, %s115
      %p124 = scmp.eq.s32.totalorder %s27, 1
      %p125 = por %p123, %p124
      %p126 = scmp.ne.s32.totalorder %s115, %s116
      %p127 = scmp.eq.s32.totalorder %s27, 0
      %p128 = por %p126, %p127
      %p129 = scmp.ne.s32.totalorder %s115, %s116
      %p130 = scmp.eq.s32.totalorder %s28, 1
      %p131 = por %p129, %p130
      %p133 = scmp.ne.s32.totalorder %s116, %s132
      %p134 = scmp.eq.s32.totalorder %s28, 0
      %p135 = por %p133, %p134
      %s136 = ssub.s32 %s30, %s37
      %p137 = scmp.eq.s32.totalorder %s136, 0
      %s139 = sadd.s32 %s138, 1
      %s140 = scalar_select %p137, %s138, %s139
      %p143 = pneg %p137
      %p144 = scmp.eq.s32.totalorder %s22, 1
      %p145 = por %p143, %p144
      %p146 = scmp.ne.s32.totalorder %s138, %s141
      %p147 = scmp.eq.s32.totalorder %s22, 0
      %p148 = por %p146, %p147
      %p149 = scmp.ne.s32.totalorder %s138, %s141
      %p150 = scmp.eq.s32.totalorder %s27, 1
      %p151 = por %p149, %p150
      %p152 = scmp.ne.s32.totalorder %s141, %s142
      %p153 = scmp.eq.s32.totalorder %s27, 0
      %p154 = por %p152, %p153
      %p155 = scmp.ne.s32.totalorder %s141, %s142
      %p156 = scmp.eq.s32.totalorder %s28, 1
      %p157 = por %p155, %p156
      %p159 = scmp.ne.s32.totalorder %s142, %s158
      %p160 = scmp.eq.s32.totalorder %s28, 0
      %p161 = por %p159, %p160
      %s162 = ssub.s32 %s30, %s37
      %p163 = scmp.eq.s32.totalorder %s162, 0
      %s165 = sadd.s32 %s164, 1
      %s166 = scalar_select %p163, %s164, %s165
      %p169 = pneg %p163
      %p170 = scmp.eq.s32.totalorder %s22, 1
      %p171 = por %p169, %p170
      %p172 = scmp.ne.s32.totalorder %s164, %s167
      %p173 = scmp.eq.s32.totalorder %s22, 0
      %p174 = por %p172, %p173
      %p175 = scmp.ne.s32.totalorder %s164, %s167
      %p176 = scmp.eq.s32.totalorder %s27, 1
      %p177 = por %p175, %p176
      %p178 = scmp.ne.s32.totalorder %s167, %s168
      %p179 = scmp.eq.s32.totalorder %s27, 0
      %p180 = por %p178, %p179
      %p181 = scmp.ne.s32.totalorder %s167, %s168
      %p182 = scmp.eq.s32.totalorder %s28, 1
      %p183 = por %p181, %p182
      %p185 = scmp.ne.s32.totalorder %s168, %s184
      %p186 = scmp.eq.s32.totalorder %s28, 0
      %p187 = por %p185, %p186
      %s189 = sadd.s32 %s188, 1
      %p192 = scmp.eq.s32.totalorder %s22, 1
      %p193 = scmp.ne.s32.totalorder %s188, %s190
      %p194 = scmp.eq.s32.totalorder %s22, 0
      %p195 = por %p193, %p194
      %p196 = scmp.ne.s32.totalorder %s188, %s190
      %p197 = scmp.eq.s32.totalorder %s27, 1
      %p198 = por %p196, %p197
      %p199 = scmp.ne.s32.totalorder %s190, %s191
      %p200 = scmp.eq.s32.totalorder %s27, 0
      %p201 = por %p199, %p200
      %p202 = scmp.ne.s32.totalorder %s190, %s191
      %p203 = scmp.eq.s32.totalorder %s28, 1
      %p204 = por %p202, %p203
      %p206 = scmp.ne.s32.totalorder %s191, %s205
      %p207 = scmp.eq.s32.totalorder %s28, 0
      %p208 = por %p206, %p207
      %s209 = ssub.s32 %s29, %s41
      %p210 = scmp.eq.s32.totalorder %s209, 0
      %s212 = sadd.s32 %s211, 1
      %s213 = scalar_select %p210, %s211, %s212
      %p216 = pneg %p210
      %p217 = scmp.eq.s32.totalorder %s22, 1
      %p218 = por %p216, %p217
      %p219 = scmp.ne.s32.totalorder %s211, %s214
      %p220 = scmp.eq.s32.totalorder %s22, 0
      %p221 = por %p219, %p220
      %p222 = scmp.ne.s32.totalorder %s211, %s214
      %p223 = scmp.eq.s32.totalorder %s27, 1
      %p224 = por %p222, %p223
      %p225 = scmp.ne.s32.totalorder %s214, %s215
      %p226 = scmp.eq.s32.totalorder %s27, 0
      %p227 = por %p225, %p226
      %p228 = scmp.ne.s32.totalorder %s214, %s215
      %p229 = scmp.eq.s32.totalorder %s28, 1
      %p230 = por %p228, %p229
      %p232 = scmp.ne.s32.totalorder %s215, %s231
      %p233 = scmp.eq.s32.totalorder %s28, 0
      %p234 = por %p232, %p233
      %p235 = scmp.le.s32.totalorder 1, %s22
      %p236 = scmp.lt.s32.totalorder %s22, 3
      %p237 = pnand %p235, %p236
      %p238 = pneg %p237
      // Predicated region
      $region9: #{ffn_batched.1} parent=5 // pred_check
        _
      $region10: #{ffn_batched.1} parent=5 // pred_check_branch
        %240 = sbr.rel (%p237) target = $region12
      $region11: #{ffn_batched.1} parent=5 // pred_region
        %s241 = ssub.s32 %s22, 1
        // Predicated region
        $region13: #{ffn_batched.1} parent=11 // pred_check
          %p242 = pneg %p81
        $region14: #{ffn_batched.1} parent=11 // pred_check_branch
          %244 = sbr.rel (%p242) target = $region16
        $region15: #{ffn_batched.1} parent=11 // pred_region
          %s246 = ssub.s32 16, 16
          %247 = vsyncadd [#allocation8], %s246
          %s249 = sshll.u32 [#allocation7], 4
          %s250 = int_to_ptr.vmem [resolvable:$true] %s249
          %252 = dma.hbm_to_vmem [thread:$0]  %s1, 16, %s250, [#allocation8]
        $region16: #{ffn_batched.1} parent=11 // pred_fallthru
          _
        // Predicated region
        $region17: #{ffn_batched.1} parent=11 // pred_check
          %p253 = pneg %p102
        $region18: #{ffn_batched.1} parent=11 // pred_check_branch
          %255 = sbr.rel (%p253) target = $region20
        $region19: #{ffn_batched.1} parent=11 // pred_region
          %s257 = ssub.s32 16, 16
          %258 = vsyncadd [#allocation8], %s257
          %s260 = sshll.u32 [#allocation9], 4
          %s261 = int_to_ptr.vmem [resolvable:$true] %s260
          %263 = dma.hbm_to_vmem [thread:$0]  %s2, 16, %s261, [#allocation8]
        $region20: #{ffn_batched.1} parent=11 // pred_fallthru
          _
        // Predicated region
        $region21: #{ffn_batched.1} parent=11 // pred_check
          %p264 = pneg %p128
        $region22: #{ffn_batched.1} parent=11 // pred_check_branch
          %266 = sbr.rel (%p264) target = $region24
        $region23: #{ffn_batched.1} parent=11 // pred_region
          %s268 = ssub.s32 512, 512
          %269 = vsyncadd [#allocation11], %s268
          %s270 = smul.addr %s32, 128
          %s271 = scalar_lea.hbm %s3, %s270
          %s272 = sshll.u32 [#allocation10], 4
          %s273 = int_to_ptr.vmem [resolvable:$true] %s272
          %278 = dma.hbm_to_vmem [thread:$0]  %s271, 512, %s273, [#allocation11], 128, 128, 8
        $region24: #{ffn_batched.1} parent=11 // pred_fallthru
          _
        // Predicated region
        $region25: #{ffn_batched.1} parent=11 // pred_check
          %p279 = pneg %p154
        $region26: #{ffn_batched.1} parent=11 // pred_check_branch
          %281 = sbr.rel (%p279) target = $region28
        $region27: #{ffn_batched.1} parent=11 // pred_region
          %s283 = ssub.s32 16, 16
          %284 = vsyncadd [#allocation11], %s283
          %s285 = smul.addr %s32, 16
          %s286 = scalar_lea.hbm %s4, %s285
          %s288 = sshll.u32 [#allocation12], 4
          %s289 = int_to_ptr.vmem [resolvable:$true] %s288
          %291 = dma.hbm_to_vmem [thread:$0]  %s286, 16, %s289, [#allocation11]
        $region28: #{ffn_batched.1} parent=11 // pred_fallthru
          _
        // Predicated region
        $region29: #{ffn_batched.1} parent=11 // pred_check
          %p292 = pneg %p180
        $region30: #{ffn_batched.1} parent=11 // pred_check_branch
          %294 = sbr.rel (%p292) target = $region32
        $region31: #{ffn_batched.1} parent=11 // pred_region
          %s295 = smul.u32 16, %s32
          %s297 = ssub.s32 2048, 2048
          %298 = vsyncadd [#allocation14], %s297
          %s299 = smul.addr %s295, 128
          %s300 = scalar_lea.hbm %s5, %s299
          %s301 = sshll.u32 [#allocation13], 4
          %s302 = int_to_ptr.vmem [resolvable:$true] %s301
          %307 = dma.hbm_to_vmem [thread:$0]  %s300, 2048, %s302, [#allocation14], 128, 128, 8
        $region32: #{ffn_batched.1} parent=11 // pred_fallthru
          _
        // Predicated region
        $region33: #{ffn_batched.1} parent=11 // pred_check
          %p308 = pneg %p201
        $region34: #{ffn_batched.1} parent=11 // pred_check_branch
          %310 = sbr.rel (%p308) target = $region36
        $region35: #{ffn_batched.1} parent=11 // pred_region
          %s312 = ssub.s32 16, 16
          %313 = vsyncadd [#allocation14], %s312
          %s315 = sshll.u32 [#allocation15], 4
          %s316 = int_to_ptr.vmem [resolvable:$true] %s315
          %318 = dma.hbm_to_vmem [thread:$0]  %s6, 16, %s316, [#allocation14]
        $region36: #{ffn_batched.1} parent=11 // pred_fallthru
          _
      $region12: #{ffn_batched.1} parent=5 // pred_fallthru
        _
      %p319 = scmp.lt.s32.totalorder %s22, 2
      // Predicated region
      $region37: #{ffn_batched.1} parent=5 // pred_check
        %p320 = pneg %p319
      $region38: #{ffn_batched.1} parent=5 // pred_check_branch
        %322 = sbr.rel (%p320) target = $region40
      $region39: #{ffn_batched.1} parent=5 // pred_region
        // Predicated region
        $region41: #{ffn_batched.1} parent=39 // pred_check
          %p323 = pneg %p54
        $region42: #{ffn_batched.1} parent=39 // pred_check_branch
          %325 = sbr.rel (%p323) target = $region44
        $region43: #{ffn_batched.1} parent=39 // pred_region
          %s326 = sand.u32 %s44, 1
          %s327 = scalar_lea.sflag [#allocation5], %s326
          %s328 = sand.u32 %s44, 1
          %s329 = smul.addr %s328, 16
          %s330 = scalar_lea.vmem [#allocation4], %s329
          %s331 = smul.u32 2, %s29
          %s333 = ssub.s32 256, 256
          %334 = vsyncadd %s327, %s333
          %s335 = smul.addr %s331, 128
          %s336 = scalar_lea.hbm %s0, %s335
          %s337 = sshll.u32 %s330, 4
          %s338 = int_to_ptr.vmem [resolvable:$true] %s337
          %343 = dma.hbm_to_vmem [thread:$0]  %s336, 256, %s338, %s327, 128, 128, 8
        $region44: #{ffn_batched.1} parent=39 // pred_fallthru
          _
      $region40: #{ffn_batched.1} parent=5 // pred_fallthru
        _
      %p344 = scmp.le.s32.totalorder 1, %s22
      %p345 = scmp.lt.s32.totalorder %s22, 3
      %p346 = pnand %p344, %p345
      %p347 = pneg %p346
      // Predicated region
      $region45: #{ffn_batched.1} parent=5 // pred_check
        _
      $region46: #{ffn_batched.1} parent=5 // pred_check_branch
        %349 = sbr.rel (%p346) target = $region48
      $region47: #{ffn_batched.1} parent=5 // pred_region
        %s350 = ssub.s32 %s22, 1
        %s351 = sand.u32 %s47, 1
        %s352 = scalar_lea.sflag [#allocation5], %s351
        %s353 = sand.u32 %s47, 1
        %s354 = smul.addr %s353, 16
        %s355 = scalar_lea.vmem [#allocation4], %s354
        // Predicated region
        $region49: #{ffn_batched.1} parent=47 // pred_check
          %p356 = pneg %p60
        $region50: #{ffn_batched.1} parent=47 // pred_check_branch
          %358 = sbr.rel (%p356) target = $region52
        $region51: #{ffn_batched.1} parent=47 // pred_region
          %359 = dma.done %s352, 256
        $region52: #{ffn_batched.1} parent=47 // pred_fallthru
          _
        // Predicated region
        $region53: #{ffn_batched.1} parent=47 // pred_check
          %p360 = pneg %p81
        $region54: #{ffn_batched.1} parent=47 // pred_check_branch
          %362 = sbr.rel (%p360) target = $region56
        $region55: #{ffn_batched.1} parent=47 // pred_region
          %363 = dma.done [#allocation8], 16
        $region56: #{ffn_batched.1} parent=47 // pred_fallthru
          _
        // Predicated region
        $region57: #{ffn_batched.1} parent=47 // pred_check
          %p364 = pneg %p102
        $region58: #{ffn_batched.1} parent=47 // pred_check_branch
          %366 = sbr.rel (%p364) target = $region60
        $region59: #{ffn_batched.1} parent=47 // pred_region
          %367 = dma.done [#allocation8], 16
        $region60: #{ffn_batched.1} parent=47 // pred_fallthru
          _
        // Predicated region
        $region61: #{ffn_batched.1} parent=47 // pred_check
          %p368 = pneg %p128
        $region62: #{ffn_batched.1} parent=47 // pred_check_branch
          %370 = sbr.rel (%p368) target = $region64
        $region63: #{ffn_batched.1} parent=47 // pred_region
          %371 = dma.done [#allocation11], 512
        $region64: #{ffn_batched.1} parent=47 // pred_fallthru
          _
        // Predicated region
        $region65: #{ffn_batched.1} parent=47 // pred_check
          %p372 = pneg %p154
        $region66: #{ffn_batched.1} parent=47 // pred_check_branch
          %374 = sbr.rel (%p372) target = $region68
        $region67: #{ffn_batched.1} parent=47 // pred_region
          %375 = dma.done [#allocation11], 16
        $region68: #{ffn_batched.1} parent=47 // pred_fallthru
          _
        // Predicated region
        $region69: #{ffn_batched.1} parent=47 // pred_check
          %p376 = pneg %p180
        $region70: #{ffn_batched.1} parent=47 // pred_check_branch
          %378 = sbr.rel (%p376) target = $region72
        $region71: #{ffn_batched.1} parent=47 // pred_region
          %379 = dma.done [#allocation14], 2048
        $region72: #{ffn_batched.1} parent=47 // pred_fallthru
          _
        // Predicated region
        $region73: #{ffn_batched.1} parent=47 // pred_check
          %p380 = pneg %p201
        $region74: #{ffn_batched.1} parent=47 // pred_check_branch
          %382 = sbr.rel (%p380) target = $region76
        $region75: #{ffn_batched.1} parent=47 // pred_region
          %383 = dma.done [#allocation14], 16
        $region76: #{ffn_batched.1} parent=47 // pred_fallthru
          _
        %s384 = sand.u32 %s47, 1
        %s385 = scalar_lea.sflag [#allocation5], %s384
        %s386 = sand.u32 %s47, 1
        %s387 = smul.addr %s386, 16
        %s388 = scalar_lea.vmem [#allocation4], %s387
        %p389 = pneg %p60
        %p390 = pneg %p57
        %p391 = pneg %p81
        %p392 = pneg %p78
        %p393 = pneg %p102
        %p394 = pneg %p99
        %p395 = pneg %p128
        %p396 = pneg %p125
        %p397 = pneg %p154
        %p398 = pneg %p151
        %p399 = pneg %p180
        %p400 = pneg %p177
        %p401 = pneg %p201
        %p402 = pneg %p198
        %p403 = pneg %p227
        %p404 = pneg %p224
        %s405 = sand.u32 %s214, 1
        %s406 = scalar_lea.sflag [#allocation6], %s405
        %s407 = sand.u32 %s214, 1
        %s408 = smul.addr %s407, 16
        %s409 = scalar_lea.vmem [#allocation16], %s408
        %s410 = smul.u32 2, %s31
        %s411 = smul.u32 16, %s32
        %s412 = smul.u32 2, %s31
        %p413 = scmp.eq.s32.totalorder %s32, 0
        // Predicated region
        $region77: #{ffn_batched.1} parent=47 // pred_check
          %p414 = pneg %p413
        $region78: #{ffn_batched.1} parent=47 // pred_check_branch
          %416 = sbr.rel (%p414) target = $region80
        $region79: #{ffn_batched.1} parent=47 // pred_region
          %v417 = vld [vmem:[%s355] sm:$0xff]
          %v418 = vld [vmem:[%s355 + $0x8] sm:$0xff]
          %vm419 = vcmask 261120
          %v420 = vsel %vm419, %v417, 0.0
          %421 = vadd.xlane.f32.xlu0 %v420
          %v422 = vpop.xlane.xlu0 %421
          %v423 = vsel %vm419, %v418, 0.0
          %424 = vadd.xlane.f32.xlu0 %v423
          %v425 = vpop.xlane.xlu0 %424
          %v426 = vmul.f32 %v422, 0.03125
          %v427 = vmul.f32 %v425, 0.03125
          %v428 = vsub.f32 %v417, %v426
          %v429 = vsub.f32 %v418, %v427
          %v430 = vmul.f32 %v428, %v428
          %v431 = vmul.f32 %v429, %v429
          %v432 = vsel %vm419, %v430, 0.0
          %433 = vadd.xlane.f32.xlu0 %v432
          %v434 = vpop.xlane.xlu0 %433
          %v435 = vsel %vm419, %v431, 0.0
          %436 = vadd.xlane.f32.xlu0 %v435
          %v437 = vpop.xlane.xlu0 %436
          %v438 = vmul.f32 %v434, 0.03125
          %v439 = vmul.f32 %v437, 0.03125
          %v440 = vadd.f32 %v438, 1e-05
          %v441 = vadd.f32 %v439, 1e-05
          %v442 = vrsqrt.pop %v440
          %v443 = vrsqrt.pop %v441
          %v444 = vmul.f32 %v428, %v442
          %v445 = vmul.f32 %v429, %v443
          %v446 = vld [vmem:[#allocation7] sm:$0x1]
          %v448 = vlaneseq
          %v449 = vshrl.u32 %v448, 7
          %v450 = vsub.s32 0, %v449
          %v451 = vrot.slane %v446, %v450
          %v453 = vmul.f32 %v444, %v451
          %v454 = vmul.f32 %v445, %v451
          %v455 = vld [vmem:[#allocation9] sm:$0x1]
          %v457 = vlaneseq
          %v458 = vshrl.u32 %v457, 7
          %v459 = vsub.s32 0, %v458
          %v460 = vrot.slane %v455, %v459
          %v462 = vadd.f32 %v453, %v460
          %v463 = vadd.f32 %v454, %v460
          %v464 = vmax.f32 %v462, 0.0
          %v465 = vmax.f32 %v463, 0.0
          %466 = vst.msk [vmem:[#allocation2] sm:$0xff] %vm419, %v464
          %467 = vst.msk [vmem:[#allocation2 + $0x8] sm:$0xff] %vm419, %v465
          %468 = vst.msk [vmem:[#allocation3] sm:$0xff] %vm419, 0.0
          %469 = vst.msk [vmem:[#allocation3 + $0x8] sm:$0xff] %vm419, 0.0
        $region80: #{ffn_batched.1} parent=47 // pred_fallthru
          _
        %v470 = vld [vmem:[#allocation2] sm:$0xff]
        %v471 = vld [vmem:[#allocation2 + $0x8] sm:$0xff]
        %v472 = vld [vmem:[#allocation10] sm:$0xff]
        %v473 = vld [vmem:[#allocation10 + $0x8] sm:$0xff]
        %v474 = vld [vmem:[#allocation10 + $0x10] sm:$0xff]
        %v475 = vld [vmem:[#allocation10 + $0x18] sm:$0xff]
        %v476 = vld [vmem:[#allocation12] sm:$0x1]
        %v478 = vlaneseq
        %v479 = vshrl.u32 %v478, 7
        %v480 = vsub.s32 0, %v479
        %v481 = vrot.slane %v476, %v480
        %vm483 = vcmask 261120
        %v485 = vsel %vm483, %v470, 0
        %v488 = vsel %vm483, %v471, 0
        %490 = vmatprep.subr.mxu0 0.0
        %491 = vmatpush1.msra.mxu0 %v472
        %492 = vmatprep.subr.mxu0 0.0
        %493 = vmatpush1.msra.mxu0 %v473
        %494 = vmatprep.subr.mxu0 0.0
        %495 = vmatpush1.msra.mxu0 %v474
        %496 = vmatprep.subr.mxu0 0.0
        %497 = vmatpush1.msra.mxu0 %v475
        %498 = vmatprep.subr.mxu0 0.0
        %499 = vmatpush1.msra.mxu0 0.0
        %500 = vmatprep.subr.mxu0 0.0
        %501 = vmatpush1.msra.mxu0 0.0
        %502 = vmatprep.subr.mxu0 0.0
        %503 = vmatpush1.msra.mxu0 0.0
        %504 = vmatprep.subr.mxu0 0.0
        %505 = vmatpush1.msra.mxu0 0.0
        %506 = vmatprep.subr.mxu0 0.0
        %507 = vmatpush1.msra.mxu0 0.0
        %508 = vmatprep.subr.mxu0 0.0
        %509 = vmatpush1.msra.mxu0 0.0
        %510 = vmatprep.subr.mxu0 0.0
        %511 = vmatpush1.msra.mxu0 0.0
        %512 = vmatprep.subr.mxu0 0.0
        %513 = vmatpush1.msra.mxu0 0.0
        %514 = vmatprep.subr.mxu0 0.0
        %515 = vmatpush1.msra.mxu0 0.0
        %516 = vmatprep.subr.mxu0 0.0
        %517 = vmatpush1.msra.mxu0 0.0
        %518 = vmatprep.subr.mxu0 0.0
        %519 = vmatpush1.msra.mxu0 0.0
        %520 = vmatprep.subr.mxu0 0.0
        %521 = vmatpush1.msra.mxu0 0.0
        %522 = vmatprep.subr.mxu0 0.0
        %523 = vmatpush1.msra.mxu0 0.0
        %524 = vmatprep.subr.mxu0 0.0
        %525 = vmatpush1.msra.mxu0 0.0
        %526 = vmatprep.subr.mxu0 0.0
        %527 = vmatpush1.msra.mxu0 0.0
        %528 = vmatprep.subr.mxu0 0.0
        %529 = vmatpush1.msra.mxu0 0.0
        %530 = vmatprep.subr.mxu0 0.0
        %531 = vmatpush1.msra.mxu0 0.0
        %532 = vmatprep.subr.mxu0 0.0
        %533 = vmatpush1.msra.mxu0 0.0
        %534 = vmatprep.subr.mxu0 0.0
        %535 = vmatpush1.msra.mxu0 0.0
        %536 = vmatprep.subr.mxu0 0.0
        %537 = vmatpush1.msra.mxu0 0.0
        %538 = vmatprep.subr.mxu0 0.0
        %539 = vmatpush1.msra.mxu0 0.0
        %540 = vmatprep.subr.mxu0 0.0
        %541 = vmatpush1.msra.mxu0 0.0
        %542 = vmatprep.subr.mxu0 0.0
        %543 = vmatpush1.msra.mxu0 0.0
        %544 = vmatprep.subr.mxu0 0.0
        %545 = vmatpush1.msra.mxu0 0.0
        %546 = vmatprep.subr.mxu0 0.0
        %547 = vmatpush1.msra.mxu0 0.0
        %548 = vmatprep.subr.mxu0 0.0
        %549 = vmatpush1.msra.mxu0 0.0
        %550 = vmatprep.subr.mxu0 0.0
        %551 = vmatpush1.msra.mxu0 0.0
        %552 = vmatprep.subr.mxu0 0.0
        %553 = vmatpush1.msra.mxu0 0.0
        %554 = vmatprep.mubr.f32.mxu0 0.0
        %555 = vmatmul.mubr.f32.gmra.mrb[0].mxu0 %v485
        %v556 = vpop.f32.mrb[0].mxu0
        %v557 = vadd.f32 %v481, %v556
        %v558 = vpop.f32.mrb[0].mxu0
        %559 = vmatprep.mubr.f32.mxu0 0.0
        %560 = vmatmul.mubr.f32.gmra.mrb[0].mxu0 %v488
        %v561 = vpop.f32.mrb[0].mxu0
        %v562 = vadd.f32 %v481, %v561
        %v563 = vpop.f32.mrb[0].mxu0
        %564 = vdwg.mxu0
        %v565 = vmax.f32 %v557, 0.0
        %v566 = vmax.f32 %v562, 0.0
        %v567 = vld [vmem:[#allocation3] sm:$0xff]
        %v568 = vld [vmem:[#allocation3 + $0x8] sm:$0xff]
        %v569 = vld [vmem:[#allocation13] sm:$0xff]
        %v570 = vld [vmem:[#allocation13 + $0x8] sm:$0xff]
        %v571 = vld [vmem:[#allocation13 + $0x10] sm:$0xff]
        %v572 = vld [vmem:[#allocation13 + $0x18] sm:$0xff]
        %v573 = vld [vmem:[#allocation13 + $0x20] sm:$0xff]
        %v574 = vld [vmem:[#allocation13 + $0x28] sm:$0xff]
        %v575 = vld [vmem:[#allocation13 + $0x30] sm:$0xff]
        %v576 = vld [vmem:[#allocation13 + $0x38] sm:$0xff]
        %v577 = vld [vmem:[#allocation13 + $0x40] sm:$0xff]
        %v578 = vld [vmem:[#allocation13 + $0x48] sm:$0xff]
        %v579 = vld [vmem:[#allocation13 + $0x50] sm:$0xff]
        %v580 = vld [vmem:[#allocation13 + $0x58] sm:$0xff]
        %v581 = vld [vmem:[#allocation13 + $0x60] sm:$0xff]
        %v582 = vld [vmem:[#allocation13 + $0x68] sm:$0xff]
        %v583 = vld [vmem:[#allocation13 + $0x70] sm:$0xff]
        %v584 = vld [vmem:[#allocation13 + $0x78] sm:$0xff]
        %585 = vmatprep.subr.mxu0 0.0
        %586 = vmatpush1.msra.mxu0 %v569
        %587 = vmatprep.subr.mxu0 0.0
        %588 = vmatpush1.msra.mxu0 %v570
        %589 = vmatprep.subr.mxu0 0.0
        %590 = vmatpush1.msra.mxu0 %v571
        %591 = vmatprep.subr.mxu0 0.0
        %592 = vmatpush1.msra.mxu0 %v572
        %593 = vmatprep.subr.mxu0 0.0
        %594 = vmatpush1.msra.mxu0 %v573
        %595 = vmatprep.subr.mxu0 0.0
        %596 = vmatpush1.msra.mxu0 %v574
        %597 = vmatprep.subr.mxu0 0.0
        %598 = vmatpush1.msra.mxu0 %v575
        %599 = vmatprep.subr.mxu0 0.0
        %600 = vmatpush1.msra.mxu0 %v576
        %601 = vmatprep.subr.mxu0 0.0
        %602 = vmatpush1.msra.mxu0 %v577
        %603 = vmatprep.subr.mxu0 0.0
        %604 = vmatpush1.msra.mxu0 %v578
        %605 = vmatprep.subr.mxu0 0.0
        %606 = vmatpush1.msra.mxu0 %v579
        %607 = vmatprep.subr.mxu0 0.0
        %608 = vmatpush1.msra.mxu0 %v580
        %609 = vmatprep.subr.mxu0 0.0
        %610 = vmatpush1.msra.mxu0 %v581
        %611 = vmatprep.subr.mxu0 0.0
        %612 = vmatpush1.msra.mxu0 %v582
        %613 = vmatprep.subr.mxu0 0.0
        %614 = vmatpush1.msra.mxu0 %v583
        %615 = vmatprep.subr.mxu0 0.0
        %616 = vmatpush1.msra.mxu0 %v584
        %617 = vmatprep.subr.mxu0 0.0
        %618 = vmatpush1.msra.mxu0 0.0
        %619 = vmatprep.subr.mxu0 0.0
        %620 = vmatpush1.msra.mxu0 0.0
        %621 = vmatprep.subr.mxu0 0.0
        %622 = vmatpush1.msra.mxu0 0.0
        %623 = vmatprep.subr.mxu0 0.0
        %624 = vmatpush1.msra.mxu0 0.0
        %625 = vmatprep.subr.mxu0 0.0
        %626 = vmatpush1.msra.mxu0 0.0
        %627 = vmatprep.subr.mxu0 0.0
        %628 = vmatpush1.msra.mxu0 0.0
        %629 = vmatprep.subr.mxu0 0.0
        %630 = vmatpush1.msra.mxu0 0.0
        %631 = vmatprep.subr.mxu0 0.0
        %632 = vmatpush1.msra.mxu0 0.0
        %633 = vmatprep.subr.mxu0 0.0
        %634 = vmatpush1.msra.mxu0 0.0
        %635 = vmatprep.subr.mxu0 0.0
        %636 = vmatpush1.msra.mxu0 0.0
        %637 = vmatprep.subr.mxu0 0.0
        %638 = vmatpush1.msra.mxu0 0.0
        %639 = vmatprep.subr.mxu0 0.0
        %640 = vmatpush1.msra.mxu0 0.0
        %641 = vmatprep.subr.mxu0 0.0
        %642 = vmatpush1.msra.mxu0 0.0
        %643 = vmatprep.subr.mxu0 0.0
        %644 = vmatpush1.msra.mxu0 0.0
        %645 = vmatprep.subr.mxu0 0.0
        %646 = vmatpush1.msra.mxu0 0.0
        %647 = vmatprep.subr.mxu0 0.0
        %648 = vmatpush1.msra.mxu0 0.0
        %649 = vmatprep.mubr.f32.mxu0 0.0
        %650 = vmatmul.mubr.f32.gmra.mrb[0].mxu0 %v565
        %v651 = vpop.f32.mrb[0].mxu0
        %v652 = vadd.f32 0.0, %v651
        %v653 = vpop.f32.mrb[0].mxu0
        %654 = vmatprep.mubr.f32.mxu0 0.0
        %655 = vmatmul.mubr.f32.gmra.mrb[0].mxu0 %v566
        %v656 = vpop.f32.mrb[0].mxu0
        %v657 = vadd.f32 0.0, %v656
        %v658 = vpop.f32.mrb[0].mxu0
        %659 = vdwg.mxu0
        %v660 = vadd.f32 %v567, %v652
        %v661 = vadd.f32 %v568, %v657
        %662 = vst.msk [vmem:[#allocation3] sm:$0xff] %vm483, %v660
        %663 = vst.msk [vmem:[#allocation3 + $0x8] sm:$0xff] %vm483, %v661
        // Predicated region
        $region81: #{ffn_batched.1} parent=47 // pred_check
          %p664 = pneg %p413
        $region82: #{ffn_batched.1} parent=47 // pred_check_branch
          %666 = sbr.rel (%p664) target = $region84
        $region83: #{ffn_batched.1} parent=47 // pred_region
          %v667 = vld [vmem:[#allocation3] sm:$0xff]
          %v668 = vld [vmem:[#allocation3 + $0x8] sm:$0xff]
          %v669 = vld [vmem:[#allocation15] sm:$0x1]
          %v671 = vlaneseq
          %v672 = vshrl.u32 %v671, 7
          %v673 = vsub.s32 0, %v672
          %v674 = vrot.slane %v669, %v673
          %v676 = vadd.f32 %v667, %v674
          %v677 = vadd.f32 %v668, %v674
          %v678 = vld [vmem:[%s355] sm:$0xff]
          %v679 = vld [vmem:[%s355 + $0x8] sm:$0xff]
          %v680 = vadd.f32 %v678, %v676
          %v681 = vadd.f32 %v679, %v677
          %682 = vst.msk [vmem:[%s409] sm:$0xff] %vm483, %v680
          %683 = vst.msk [vmem:[%s409 + $0x8] sm:$0xff] %vm483, %v681
        $region84: #{ffn_batched.1} parent=47 // pred_fallthru
          _
        %s684 = sand.u32 %s214, 1
        %s685 = scalar_lea.sflag [#allocation6], %s684
        %s686 = sand.u32 %s214, 1
        %s687 = smul.addr %s686, 16
        %s688 = scalar_lea.vmem [#allocation16], %s687
        // Predicated region
        $region85: #{ffn_batched.1} parent=47 // pred_check
          %p689 = pneg %p224
        $region86: #{ffn_batched.1} parent=47 // pred_check_branch
          %691 = sbr.rel (%p689) target = $region88
        $region87: #{ffn_batched.1} parent=47 // pred_region
          %s692 = smul.u32 2, %s31
          %s694 = ssub.s32 256, 256
          %695 = vsyncadd %s685, %s694
          %s696 = smul.addr %s692, 128
          %s697 = scalar_lea.hbm %s7, %s696
          %s698 = sshll.u32 %s688, 4
          %s699 = int_to_ptr.vmem [resolvable:$true] %s698
          %704 = dma.vmem_to_hbm [thread:$0]  %s699, 256, %s697, %s685, 128, 128, 8
        $region88: #{ffn_batched.1} parent=47 // pred_fallthru
          _
      $region48: #{ffn_batched.1} parent=5 // pred_fallthru
        _
      %p705 = scmp.le.s32.totalorder 2, %s22
      // Predicated region
      $region89: #{ffn_batched.1} parent=5 // pred_check
        %p706 = pneg %p705
      $region90: #{ffn_batched.1} parent=5 // pred_check_branch
        %708 = sbr.rel (%p706) target = $region92
      $region91: #{ffn_batched.1} parent=5 // pred_region
        %s709 = ssub.s32 %s22, 2
        // Predicated region
        $region93: #{ffn_batched.1} parent=91 // pred_check
          %p710 = pneg %p230
        $region94: #{ffn_batched.1} parent=91 // pred_check_branch
          %712 = sbr.rel (%p710) target = $region96
        $region95: #{ffn_batched.1} parent=91 // pred_region
          %s713 = sand.u32 %s215, 1
          %s714 = scalar_lea.sflag [#allocation6], %s713
          %s715 = sand.u32 %s215, 1
          %s716 = smul.addr %s715, 16
          %s717 = scalar_lea.vmem [#allocation16], %s716
          %718 = dma.done %s714, 256
        $region96: #{ffn_batched.1} parent=91 // pred_fallthru
          _
      $region92: #{ffn_batched.1} parent=5 // pred_fallthru
        _
    $region6: #{ffn_batched.1} parent=1 // loop_footer
      %s26 = sadd.s32 1, %s22
    $region7: #{ffn_batched.1} parent=1 // loop_footer_branch
      %21 = sbr.rel target = $region3
    $region8: #{ffn_batched.1} parent=1 // loop_exit
      _
    %719 = vsyncpa [#allocation5], 1
    %s720 = scalar_lea.sflag [#allocation5], 1
    %721 = vsyncpa %s720, 1
    %722 = vsyncpa [#allocation8], 1
    %723 = vsyncpa [#allocation11], 1
    %724 = vsyncpa [#allocation14], 1
    %725 = vsyncpa [#allocation6], 1
    %s726 = scalar_lea.sflag [#allocation6], 1
    %727 = vsyncpa %s726, 1

// kernel: ffn_batched.1
$region0: #{ffn_batched.1}
  #allocation0 [shape = 'u32[]', space=smem, size = 0x4, offset = 0x4, fixed_abs, tag = 'smem constant byte address 0x4 - core index']
  #allocation1 [shape = 'u32[144,128]{1,0:T(1,128)}', space=vmem, size = 0x12000, scoped, tag = 'internal scratch']
  #allocation2 [shape = 'f32[16,32]{1,0:T(8,128)}', space=vmem, size = 0x2000, scoped, tag = 'scratch operand']
  #allocation3 [shape = 'f32[16,32]{1,0:T(8,128)}', space=vmem, size = 0x2000, scoped, tag = 'scratch operand']
  %s0 = inlined_call_operand.hbm [shape: f32[32,32], index: 0, kind: input, shape index: {}]
  %s1 = inlined_call_operand.hbm [shape: f32[1,32], index: 1, kind: input, shape index: {}]
  %s2 = inlined_call_operand.hbm [shape: f32[1,32], index: 2, kind: input, shape index: {}]
  %s3 = inlined_call_operand.hbm [shape: f32[32,128], index: 3, kind: input, shape index: {}]
  %s4 = inlined_call_operand.hbm [shape: f32[1,128], index: 4, kind: input, shape index: {}]
  %s5 = inlined_call_operand.hbm [shape: f32[128,32], index: 5, kind: input, shape index: {}]
  %s6 = inlined_call_operand.hbm [shape: f32[1,32], index: 6, kind: input, shape index: {}]
  %s7 = inlined_call_operand.hbm [shape: f32[32,32], index: 7, kind: output, shape index: {}]
  %s8 = sld [smem:[#allocation0]]
  $region97: #{ffn_batched.1} parent=0
    _
  %s10 = ssub.s32 1, %s8
  %s11 = scalar_select 0, %s10, %s8
  $region1: #{ffn_batched.1} parent=0
    #allocation4 [shape = 'u8[16384]{0}', space=vmem, size = 0x4000, scoped, tag = 'input window, operand 0']
    #allocation5 [shape = 's32[2]{0}', space=sflag, size = 0x8, scoped, tag = 'scoped memory for ffn_batched.1']
    #allocation6 [shape = 's32[2]{0}', space=sflag, size = 0x8, scoped, tag = 'scoped memory for ffn_batched.1']
    #allocation7 [shape = 'u8[512]{0}', space=vmem, size = 0x400, scoped, tag = 'input window, operand 1, single buffered']
    #allocation8 [shape = 's32[1]{0}', space=sflag, size = 0x4, scoped, tag = 'scoped memory for ffn_batched.1']
    #allocation9 [shape = 'u8[512]{0}', space=vmem, size = 0x400, scoped, tag = 'input window, operand 2, single buffered']
    #allocation10 [shape = 'u8[16384]{0}', space=vmem, size = 0x4000, scoped, tag = 'input window, operand 3, single buffered']
    #allocation11 [shape = 's32[1]{0}', space=sflag, size = 0x4, scoped, tag = 'scoped memory for ffn_batched.1']
    #allocation12 [shape = 'u8[512]{0}', space=vmem, size = 0x400, scoped, tag = 'input window, operand 4, single buffered']
    #allocation13 [shape = 'u8[65536]{0}', space=vmem, size = 0x10000, scoped, tag = 'input window, operand 5, single buffered']
    #allocation14 [shape = 's32[1]{0}', space=sflag, size = 0x4, scoped, tag = 'scoped memory for ffn_batched.1']
    #allocation15 [shape = 'u8[512]{0}', space=vmem, size = 0x400, scoped, tag = 'input window, operand 6, single buffered']
    #allocation16 [shape = 'u8[16384]{0}', space=vmem, size = 0x4000, scoped, tag = 'output window, operand 0']
    %12 = vsyncpa [#allocation5], 0
    %s13 = scalar_lea.sflag [#allocation5], 1
    %14 = vsyncpa %s13, 0
    %15 = vsyncpa [#allocation8], 0
    %16 = vsyncpa [#allocation11], 0
    %17 = vsyncpa [#allocation14], 0
    %18 = vsyncpa [#allocation6], 0
    %s19 = scalar_lea.sflag [#allocation6], 1
    %20 = vsyncpa %s19, 0
    loop: start=0, step=1, limit=4
    $region2: #{ffn_batched.1} parent=1 // loop_pre_header
      _
    $region3: #{ffn_batched.1} parent=1 // loop_header
      %s22 = sphi 0, %s26
      %p23 = scmp.ge.s32.totalorder %s22, 4
      %s29 = sphi 0, %s41
      %s30 = sphi 0, %s37
      %s31 = sphi 0, %s29
      %s32 = sphi 0, %s30
      %s33 = sphi 0, %s31
      %s34 = sphi 0, %s32
      %s44 = sphi 0, %s46
      %s47 = sphi 0, %s44
      %s48 = sphi 0, %s47
      %s64 = sphi 0, %s48
      %s68 = sphi 0, %s68
      %s70 = sphi 0, %s68
      %s71 = sphi 0, %s70
      %s85 = sphi 0, %s71
      %s89 = sphi 0, %s89
      %s91 = sphi 0, %s89
      %s92 = sphi 0, %s91
      %s106 = sphi 0, %s92
      %s112 = sphi 0, %s114
      %s115 = sphi 0, %s112
      %s116 = sphi 0, %s115
      %s132 = sphi 0, %s116
      %s138 = sphi 0, %s140
      %s141 = sphi 0, %s138
      %s142 = sphi 0, %s141
      %s158 = sphi 0, %s142
      %s164 = sphi 0, %s166
      %s167 = sphi 0, %s164
      %s168 = sphi 0, %s167
      %s184 = sphi 0, %s168
      %s188 = sphi 0, %s188
      %s190 = sphi 0, %s188
      %s191 = sphi 0, %s190
      %s205 = sphi 0, %s191
      %s211 = sphi 0, %s213
      %s214 = sphi 0, %s211
      %s215 = sphi 0, %s214
      %s231 = sphi 0, %s215
    $region4: #{ffn_batched.1} parent=1 // loop_header_branch
      %25 = sbr.rel (%p23) target = $region8
    $region5: #{ffn_batched.1} parent=1 // loop_body
      %s27 = ssub.s32 %s22, 1
      %s28 = ssub.s32 %s22, 2
      %s35 = sadd.s32 1, %s30
      %p36 = scmp.ge.s32.totalorder %s35, 1
      %s37 = scalar_select %p36, 0, %s35
      %s38 = sadd.s32 1, %s29
      %s39 = scalar_select %p36, %s38, %s29
      %p40 = scmp.ge.s32.totalorder %s39, 2
      %s41 = scalar_select %p40, 0, %s39
      %s42 = ssub.s32 %s29, %s41
      %p43 = scmp.eq.s32.totalorder %s42, 0
      %s45 = sadd.s32 %s44, 1
      %s46 = scalar_select %p43, %s44, %s45
      %p49 = pneg %p43
      %p50 = scmp.eq.s32.totalorder %s22, 1
      %p51 = por %p49, %p50
      %p52 = scmp.ne.s32.totalorder %s44, %s47
      %p53 = scmp.eq.s32.totalorder %s22, 0
      %p54 = por %p52, %p53
      %p55 = scmp.ne.s32.totalorder %s44, %s47
      %p56 = scmp.eq.s32.totalorder %s27, 1
      %p57 = por %p55, %p56
      %p58 = scmp.ne.s32.totalorder %s47, %s48
      %p59 = scmp.eq.s32.totalorder %s27, 0
      %p60 = por %p58, %p59
      %p61 = scmp.ne.s32.totalorder %s47, %s48
      %p62 = scmp.eq.s32.totalorder %s28, 1
      %p63 = por %p61, %p62
      %p65 = scmp.ne.s32.totalorder %s48, %s64
      %p66 = scmp.eq.s32.totalorder %s28, 0
      %p67 = por %p65, %p66
      %s69 = sadd.s32 %s68, 1
      %p72 = scmp.eq.s32.totalorder %s22, 1
      %p73 = scmp.ne.s32.totalorder %s68, %s70
      %p74 = scmp.eq.s32.totalorder %s22, 0
      %p75 = por %p73, %p74
      %p76 = scmp.ne.s32.totalorder %s68, %s70
      %p77 = scmp.eq.s32.totalorder %s27, 1
      %p78 = por %p76, %p77
      %p79 = scmp.ne.s32.totalorder %s70, %s71
      %p80 = scmp.eq.s32.totalorder %s27, 0
      %p81 = por %p79, %p80
      %p82 = scmp.ne.s32.totalorder %s70, %s71
      %p83 = scmp.eq.s32.totalorder %s28, 1
      %p84 = por %p82, %p83
      %p86 = scmp.ne.s32.totalorder %s71, %s85
      %p87 = scmp.eq.s32.totalorder %s28, 0
      %p88 = por %p86, %p87
      %s90 = sadd.s32 %s89, 1
      %p93 = scmp.eq.s32.totalorder %s22, 1
      %p94 = scmp.ne.s32.totalorder %s89, %s91
      %p95 = scmp.eq.s32.totalorder %s22, 0
      %p96 = por %p94, %p95
      %p97 = scmp.ne.s32.totalorder %s89, %s91
      %p98 = scmp.eq.s32.totalorder %s27, 1
      %p99 = por %p97, %p98
      %p100 = scmp.ne.s32.totalorder %s91, %s92
      %p101 = scmp.eq.s32.totalorder %s27, 0
      %p102 = por %p100, %p101
      %p103 = scmp.ne.s32.totalorder %s91, %s92
      %p104 = scmp.eq.s32.totalorder %s28, 1
      %p105 = por %p103, %p104
      %p107 = scmp.ne.s32.totalorder %s92, %s106
      %p108 = scmp.eq.s32.totalorder %s28, 0
      %p109 = por %p107, %p108
      %s110 = ssub.s32 %s30, %s37
      %p111 = scmp.eq.s32.totalorder %s110, 0
      %s113 = sadd.s32 %s112, 1
      %s114 = scalar_select %p111, %s112, %s113
      %p117 = pneg %p111
      %p118 = scmp.eq.s32.totalorder %s22, 1
      %p119 = por %p117, %p118
      %p120 = scmp.ne.s32.totalorder %s112, %s115
      %p121 = scmp.eq.s32.totalorder %s22, 0
      %p122 = por %p120, %p121
      %p123 = scmp.ne.s32.totalorder %s112, %s115
      %p124 = scmp.eq.s32.totalorder %s27, 1
      %p125 = por %p123, %p124
      %p126 = scmp.ne.s32.totalorder %s115, %s116
      %p127 = scmp.eq.s32.totalorder %s27, 0
      %p128 = por %p126, %p127
      %p129 = scmp.ne.s32.totalorder %s115, %s116
      %p130 = scmp.eq.s32.totalorder %s28, 1
      %p131 = por %p129, %p130
      %p133 = scmp.ne.s32.totalorder %s116, %s132
      %p134 = scmp.eq.s32.totalorder %s28, 0
      %p135 = por %p133, %p134
      %s136 = ssub.s32 %s30, %s37
      %p137 = scmp.eq.s32.totalorder %s136, 0
      %s139 = sadd.s32 %s138, 1
      %s140 = scalar_select %p137, %s138, %s139
      %p143 = pneg %p137
      %p144 = scmp.eq.s32.totalorder %s22, 1
      %p145 = por %p143, %p144
      %p146 = scmp.ne.s32.totalorder %s138, %s141
      %p147 = scmp.eq.s32.totalorder %s22, 0
      %p148 = por %p146, %p147
      %p149 = scmp.ne.s32.totalorder %s138, %s141
      %p150 = scmp.eq.s32.totalorder %s27, 1
      %p151 = por %p149, %p150
      %p152 = scmp.ne.s32.totalorder %s141, %s142
      %p153 = scmp.eq.s32.totalorder %s27, 0
      %p154 = por %p152, %p153
      %p155 = scmp.ne.s32.totalorder %s141, %s142
      %p156 = scmp.eq.s32.totalorder %s28, 1
      %p157 = por %p155, %p156
      %p159 = scmp.ne.s32.totalorder %s142, %s158
      %p160 = scmp.eq.s32.totalorder %s28, 0
      %p161 = por %p159, %p160
      %s162 = ssub.s32 %s30, %s37
      %p163 = scmp.eq.s32.totalorder %s162, 0
      %s165 = sadd.s32 %s164, 1
      %s166 = scalar_select %p163, %s164, %s165
      %p169 = pneg %p163
      %p170 = scmp.eq.s32.totalorder %s22, 1
      %p171 = por %p169, %p170
      %p172 = scmp.ne.s32.totalorder %s164, %s167
      %p173 = scmp.eq.s32.totalorder %s22, 0
      %p174 = por %p172, %p173
      %p175 = scmp.ne.s32.totalorder %s164, %s167
      %p176 = scmp.eq.s32.totalorder %s27, 1
      %p177 = por %p175, %p176
      %p178 = scmp.ne.s32.totalorder %s167, %s168
      %p179 = scmp.eq.s32.totalorder %s27, 0
      %p180 = por %p178, %p179
      %p181 = scmp.ne.s32.totalorder %s167, %s168
      %p182 = scmp.eq.s32.totalorder %s28, 1
      %p183 = por %p181, %p182
      %p185 = scmp.ne.s32.totalorder %s168, %s184
      %p186 = scmp.eq.s32.totalorder %s28, 0
      %p187 = por %p185, %p186
      %s189 = sadd.s32 %s188, 1
      %p192 = scmp.eq.s32.totalorder %s22, 1
      %p193 = scmp.ne.s32.totalorder %s188, %s190
      %p194 = scmp.eq.s32.totalorder %s22, 0
      %p195 = por %p193, %p194
      %p196 = scmp.ne.s32.totalorder %s188, %s190
      %p197 = scmp.eq.s32.totalorder %s27, 1
      %p198 = por %p196, %p197
      %p199 = scmp.ne.s32.totalorder %s190, %s191
      %p200 = scmp.eq.s32.totalorder %s27, 0
      %p201 = por %p199, %p200
      %p202 = scmp.ne.s32.totalorder %s190, %s191
      %p203 = scmp.eq.s32.totalorder %s28, 1
      %p204 = por %p202, %p203
      %p206 = scmp.ne.s32.totalorder %s191, %s205
      %p207 = scmp.eq.s32.totalorder %s28, 0
      %p208 = por %p206, %p207
      %s209 = ssub.s32 %s29, %s41
      %p210 = scmp.eq.s32.totalorder %s209, 0
      %s212 = sadd.s32 %s211, 1
      %s213 = scalar_select %p210, %s211, %s212
      %p216 = pneg %p210
      %p217 = scmp.eq.s32.totalorder %s22, 1
      %p218 = por %p216, %p217
      %p219 = scmp.ne.s32.totalorder %s211, %s214
      %p220 = scmp.eq.s32.totalorder %s22, 0
      %p221 = por %p219, %p220
      %p222 = scmp.ne.s32.totalorder %s211, %s214
      %p223 = scmp.eq.s32.totalorder %s27, 1
      %p224 = por %p222, %p223
      %p225 = scmp.ne.s32.totalorder %s214, %s215
      %p226 = scmp.eq.s32.totalorder %s27, 0
      %p227 = por %p225, %p226
      %p228 = scmp.ne.s32.totalorder %s214, %s215
      %p229 = scmp.eq.s32.totalorder %s28, 1
      %p230 = por %p228, %p229
      %p232 = scmp.ne.s32.totalorder %s215, %s231
      %p233 = scmp.eq.s32.totalorder %s28, 0
      %p234 = por %p232, %p233
      %p235 = scmp.le.s32.totalorder 1, %s22
      %p236 = scmp.lt.s32.totalorder %s22, 3
      %p237 = pnand %p235, %p236
      %p238 = pneg %p237
      // Predicated region
      $region9: #{ffn_batched.1} parent=5 // pred_check
        _
      $region10: #{ffn_batched.1} parent=5 // pred_check_branch
        %240 = sbr.rel (%p237) target = $region12
      $region11: #{ffn_batched.1} parent=5 // pred_region
        %s241 = ssub.s32 %s22, 1
        // Predicated region
        $region13: #{ffn_batched.1} parent=11 // pred_check
          %p242 = pneg %p81
        $region14: #{ffn_batched.1} parent=11 // pred_check_branch
          %244 = sbr.rel (%p242) target = $region16
        $region15: #{ffn_batched.1} parent=11 // pred_region
          %s246 = ssub.s32 16, 16
          %247 = vsyncadd [#allocation8], %s246
          %s249 = sshll.u32 [#allocation7], 4
          %s250 = int_to_ptr.vmem [resolvable:$true] %s249
          %252 = dma.hbm_to_vmem [thread:$0]  %s1, 16, %s250, [#allocation8]
        $region16: #{ffn_batched.1} parent=11 // pred_fallthru
          _
        // Predicated region
        $region17: #{ffn_batched.1} parent=11 // pred_check
          %p253 = pneg %p102
        $region18: #{ffn_batched.1} parent=11 // pred_check_branch
          %255 = sbr.rel (%p253) target = $region20
        $region19: #{ffn_batched.1} parent=11 // pred_region
          %s257 = ssub.s32 16, 16
          %258 = vsyncadd [#allocation8], %s257
          %s260 = sshll.u32 [#allocation9], 4
          %s261 = int_to_ptr.vmem [resolvable:$true] %s260
          %263 = dma.hbm_to_vmem [thread:$0]  %s2, 16, %s261, [#allocation8]
        $region20: #{ffn_batched.1} parent=11 // pred_fallthru
          _
        // Predicated region
        $region21: #{ffn_batched.1} parent=11 // pred_check
          %p264 = pneg %p128
        $region22: #{ffn_batched.1} parent=11 // pred_check_branch
          %266 = sbr.rel (%p264) target = $region24
        $region23: #{ffn_batched.1} parent=11 // pred_region
          %s268 = ssub.s32 512, 512
          %269 = vsyncadd [#allocation11], %s268
          %s270 = smul.addr %s32, 128
          %s271 = scalar_lea.hbm %s3, %s270
          %s272 = sshll.u32 [#allocation10], 4
          %s273 = int_to_ptr.vmem [resolvable:$true] %s272
          %278 = dma.hbm_to_vmem [thread:$0]  %s271, 512, %s273, [#allocation11], 128, 128, 8
        $region24: #{ffn_batched.1} parent=11 // pred_fallthru
          _
        // Predicated region
        $region25: #{ffn_batched.1} parent=11 // pred_check
          %p279 = pneg %p154
        $region26: #{ffn_batched.1} parent=11 // pred_check_branch
          %281 = sbr.rel (%p279) target = $region28
        $region27: #{ffn_batched.1} parent=11 // pred_region
          %s283 = ssub.s32 16, 16
          %284 = vsyncadd [#allocation11], %s283
          %s285 = smul.addr %s32, 16
          %s286 = scalar_lea.hbm %s4, %s285
          %s288 = sshll.u32 [#allocation12], 4
          %s289 = int_to_ptr.vmem [resolvable:$true] %s288
          %291 = dma.hbm_to_vmem [thread:$0]  %s286, 16, %s289, [#allocation11]
        $region28: #{ffn_batched.1} parent=11 // pred_fallthru
          _
        // Predicated region
        $region29: #{ffn_batched.1} parent=11 // pred_check
          %p292 = pneg %p180
        $region30: #{ffn_batched.1} parent=11 // pred_check_branch
          %294 = sbr.rel (%p292) target = $region32
        $region31: #{ffn_batched.1} parent=11 // pred_region
          %s295 = smul.u32 16, %s32
          %s297 = ssub.s32 2048, 2048
          %298 = vsyncadd [#allocation14], %s297
          %s299 = smul.addr %s295, 128
          %s300 = scalar_lea.hbm %s5, %s299
          %s301 = sshll.u32 [#allocation13], 4
          %s302 = int_to_ptr.vmem [resolvable:$true] %s301
          %307 = dma.hbm_to_vmem [thread:$0]  %s300, 2048, %s302, [#allocation14], 128, 128, 8
        $region32: #{ffn_batched.1} parent=11 // pred_fallthru
          _
        // Predicated region
        $region33: #{ffn_batched.1} parent=11 // pred_check
          %p308 = pneg %p201
        $region34: #{ffn_batched.1} parent=11 // pred_check_branch
          %310 = sbr.rel (%p308) target = $region36
        $region35: #{ffn_batched.1} parent=11 // pred_region
          %s312 = ssub.s32 16, 16
          %313 = vsyncadd [#allocation14], %s312
          %s315 = sshll.u32 [#allocation15], 4
          %s316 = int_to_ptr.vmem [resolvable:$true] %s315
          %318 = dma.hbm_to_vmem [thread:$0]  %s6, 16, %s316, [#allocation14]
        $region36: #{ffn_batched.1} parent=11 // pred_fallthru
          _
      $region12: #{ffn_batched.1} parent=5 // pred_fallthru
        _
      %p319 = scmp.lt.s32.totalorder %s22, 2
      // Predicated region
      $region37: #{ffn_batched.1} parent=5 // pred_check
        %p320 = pneg %p319
      $region38: #{ffn_batched.1} parent=5 // pred_check_branch
        %322 = sbr.rel (%p320) target = $region40
      $region39: #{ffn_batched.1} parent=5 // pred_region
        // Predicated region
        $region41: #{ffn_batched.1} parent=39 // pred_check
          %p323 = pneg %p54
        $region42: #{ffn_batched.1} parent=39 // pred_check_branch
          %325 = sbr.rel (%p323) target = $region44
        $region43: #{ffn_batched.1} parent=39 // pred_region
          %s326 = sand.u32 %s44, 1
          %s327 = scalar_lea.sflag [#allocation5], %s326
          %s328 = sand.u32 %s44, 1
          %s329 = smul.addr %s328, 16
          %s330 = scalar_lea.vmem [#allocation4], %s329
          %s331 = smul.u32 2, %s29
          %s333 = ssub.s32 256, 256
          %334 = vsyncadd %s327, %s333
          %s335 = smul.addr %s331, 128
          %s336 = scalar_lea.hbm %s0, %s335
          %s337 = sshll.u32 %s330, 4
          %s338 = int_to_ptr.vmem [resolvable:$true] %s337
          %343 = dma.hbm_to_vmem [thread:$0]  %s336, 256, %s338, %s327, 128, 128, 8
        $region44: #{ffn_batched.1} parent=39 // pred_fallthru
          _
      $region40: #{ffn_batched.1} parent=5 // pred_fallthru
        _
      %p344 = scmp.le.s32.totalorder 1, %s22
      %p345 = scmp.lt.s32.totalorder %s22, 3
      %p346 = pnand %p344, %p345
      %p347 = pneg %p346
      // Predicated region
      $region45: #{ffn_batched.1} parent=5 // pred_check
        _
      $region46: #{ffn_batched.1} parent=5 // pred_check_branch
        %349 = sbr.rel (%p346) target = $region48
      $region47: #{ffn_batched.1} parent=5 // pred_region
        %s350 = ssub.s32 %s22, 1
        %s351 = sand.u32 %s47, 1
        %s352 = scalar_lea.sflag [#allocation5], %s351
        %s353 = sand.u32 %s47, 1
        %s354 = smul.addr %s353, 16
        %s355 = scalar_lea.vmem [#allocation4], %s354
        // Predicated region
        $region49: #{ffn_batched.1} parent=47 // pred_check
          %p356 = pneg %p60
        $region50: #{ffn_batched.1} parent=47 // pred_check_branch
          %358 = sbr.rel (%p356) target = $region52
        $region51: #{ffn_batched.1} parent=47 // pred_region
          %359 = dma.done %s352, 256
        $region52: #{ffn_batched.1} parent=47 // pred_fallthru
          _
        // Predicated region
        $region53: #{ffn_batched.1} parent=47 // pred_check
          %p360 = pneg %p81
        $region54: #{ffn_batched.1} parent=47 // pred_check_branch
          %362 = sbr.rel (%p360) target = $region56
        $region55: #{ffn_batched.1} parent=47 // pred_region
          %363 = dma.done [#allocation8], 16
        $region56: #{ffn_batched.1} parent=47 // pred_fallthru
          _
        // Predicated region
        $region57: #{ffn_batched.1} parent=47 // pred_check
          %p364 = pneg %p102
        $region58: #{ffn_batched.1} parent=47 // pred_check_branch
          %366 = sbr.rel (%p364) target = $region60
        $region59: #{ffn_batched.1} parent=47 // pred_region
          %367 = dma.done [#allocation8], 16
        $region60: #{ffn_batched.1} parent=47 // pred_fallthru
          _
        // Predicated region
        $region61: #{ffn_batched.1} parent=47 // pred_check
          %p368 = pneg %p128
        $region62: #{ffn_batched.1} parent=47 // pred_check_branch
          %370 = sbr.rel (%p368) target = $region64
        $region63: #{ffn_batched.1} parent=47 // pred_region
          %371 = dma.done [#allocation11], 512
        $region64: #{ffn_batched.1} parent=47 // pred_fallthru
          _
        // Predicated region
        $region65: #{ffn_batched.1} parent=47 // pred_check
          %p372 = pneg %p154
        $region66: #{ffn_batched.1} parent=47 // pred_check_branch
          %374 = sbr.rel (%p372) target = $region68
        $region67: #{ffn_batched.1} parent=47 // pred_region
          %375 = dma.done [#allocation11], 16
        $region68: #{ffn_batched.1} parent=47 // pred_fallthru
          _
        // Predicated region
        $region69: #{ffn_batched.1} parent=47 // pred_check
          %p376 = pneg %p180
        $region70: #{ffn_batched.1} parent=47 // pred_check_branch
          %378 = sbr.rel (%p376) target = $region72
        $region71: #{ffn_batched.1} parent=47 // pred_region
          %379 = dma.done [#allocation14], 2048
        $region72: #{ffn_batched.1} parent=47 // pred_fallthru
          _
        // Predicated region
        $region73: #{ffn_batched.1} parent=47 // pred_check
          %p380 = pneg %p201
        $region74: #{ffn_batched.1} parent=47 // pred_check_branch
          %382 = sbr.rel (%p380) target = $region76
        $region75: #{ffn_batched.1} parent=47 // pred_region
          %383 = dma.done [#allocation14], 16
        $region76: #{ffn_batched.1} parent=47 // pred_fallthru
          _
        %s384 = sand.u32 %s47, 1
        %s385 = scalar_lea.sflag [#allocation5], %s384
        %s386 = sand.u32 %s47, 1
        %s387 = smul.addr %s386, 16
        %s388 = scalar_lea.vmem [#allocation4], %s387
        %p389 = pneg %p60
        %p390 = pneg %p57
        %p391 = pneg %p81
        %p392 = pneg %p78
        %p393 = pneg %p102
        %p394 = pneg %p99
        %p395 = pneg %p128
        %p396 = pneg %p125
        %p397 = pneg %p154
        %p398 = pneg %p151
        %p399 = pneg %p180
        %p400 = pneg %p177
        %p401 = pneg %p201
        %p402 = pneg %p198
        %p403 = pneg %p227
        %p404 = pneg %p224
        %s405 = sand.u32 %s214, 1
        %s406 = scalar_lea.sflag [#allocation6], %s405
        %s407 = sand.u32 %s214, 1
        %s408 = smul.addr %s407, 16
        %s409 = scalar_lea.vmem [#allocation16], %s408
        %s410 = smul.u32 2, %s31
        %s411 = smul.u32 16, %s32
        %s412 = smul.u32 2, %s31
        %p413 = scmp.eq.s32.totalorder %s32, 0
        // Predicated region
        $region77: #{ffn_batched.1} parent=47 // pred_check
          %p414 = pneg %p413
        $region78: #{ffn_batched.1} parent=47 // pred_check_branch
          %416 = sbr.rel (%p414) target = $region80
        $region79: #{ffn_batched.1} parent=47 // pred_region
          %v417 = vld [vmem:[%s355] sm:$0xff]
          %v418 = vld [vmem:[%s355 + $0x8] sm:$0xff]
          %vm419 = vcmask 261120
          %v420 = vsel %vm419, %v417, 0.0
          %421 = vadd.xlane.f32.xlu0 %v420
          %v422 = vpop.xlane.xlu0 %421
          %v423 = vsel %vm419, %v418, 0.0
          %424 = vadd.xlane.f32.xlu0 %v423
          %v425 = vpop.xlane.xlu0 %424
          %v426 = vmul.f32 %v422, 0.03125
          %v427 = vmul.f32 %v425, 0.03125
          %v428 = vsub.f32 %v417, %v426
          %v429 = vsub.f32 %v418, %v427
          %v430 = vmul.f32 %v428, %v428
          %v431 = vmul.f32 %v429, %v429
          %v432 = vsel %vm419, %v430, 0.0
          %433 = vadd.xlane.f32.xlu0 %v432
          %v434 = vpop.xlane.xlu0 %433
          %v435 = vsel %vm419, %v431, 0.0
          %436 = vadd.xlane.f32.xlu0 %v435
          %v437 = vpop.xlane.xlu0 %436
          %v438 = vmul.f32 %v434, 0.03125
          %v439 = vmul.f32 %v437, 0.03125
          %v440 = vadd.f32 %v438, 1e-05
          %v441 = vadd.f32 %v439, 1e-05
          %v442 = vrsqrt.pop %v440
          %v443 = vrsqrt.pop %v441
          %v444 = vmul.f32 %v428, %v442
          %v445 = vmul.f32 %v429, %v443
          %v446 = vld [vmem:[#allocation7] sm:$0x1]
          %v448 = vlaneseq
          %v449 = vshrl.u32 %v448, 7
          %v450 = vsub.s32 0, %v449
          %v451 = vrot.slane %v446, %v450
          %v453 = vmul.f32 %v444, %v451
          %v454 = vmul.f32 %v445, %v451
          %v455 = vld [vmem:[#allocation9] sm:$0x1]
          %v457 = vlaneseq
          %v458 = vshrl.u32 %v457, 7
          %v459 = vsub.s32 0, %v458
          %v460 = vrot.slane %v455, %v459
          %v462 = vadd.f32 %v453, %v460
          %v463 = vadd.f32 %v454, %v460
          %v464 = vmax.f32 %v462, 0.0
          %v465 = vmax.f32 %v463, 0.0
          %466 = vst.msk [vmem:[#allocation2] sm:$0xff] %vm419, %v464
          %467 = vst.msk [vmem:[#allocation2 + $0x8] sm:$0xff] %vm419, %v465
          %468 = vst.msk [vmem:[#allocation3] sm:$0xff] %vm419, 0.0
          %469 = vst.msk [vmem:[#allocation3 + $0x8] sm:$0xff] %vm419, 0.0
        $region80: #{ffn_batched.1} parent=47 // pred_fallthru
          _
        %v470 = vld [vmem:[#allocation2] sm:$0xff]
        %v471 = vld [vmem:[#allocation2 + $0x8] sm:$0xff]
        %v472 = vld [vmem:[#allocation10] sm:$0xff]
        %v473 = vld [vmem:[#allocation10 + $0x8] sm:$0xff]
        %v474 = vld [vmem:[#allocation10 + $0x10] sm:$0xff]
        %v475 = vld [vmem:[#allocation10 + $0x18] sm:$0xff]
        %v476 = vld [vmem:[#allocation12] sm:$0x1]
        %v478 = vlaneseq
        %v479 = vshrl.u32 %v478, 7
        %v480 = vsub.s32 0, %v479
        %v481 = vrot.slane %v476, %v480
        %vm483 = vcmask 261120
        %v485 = vsel %vm483, %v470, 0
        %v488 = vsel %vm483, %v471, 0
        %490 = vmatprep.subr.mxu0 0.0
        %491 = vmatpush1.msra.mxu0 %v472
        %492 = vmatprep.subr.mxu0 0.0
        %493 = vmatpush1.msra.mxu0 %v473
        %494 = vmatprep.subr.mxu0 0.0
        %495 = vmatpush1.msra.mxu0 %v474
        %496 = vmatprep.subr.mxu0 0.0
        %497 = vmatpush1.msra.mxu0 %v475
        %498 = vmatprep.subr.mxu0 0.0
        %499 = vmatpush1.msra.mxu0 0.0
        %500 = vmatprep.subr.mxu0 0.0
        %501 = vmatpush1.msra.mxu0 0.0
        %502 = vmatprep.subr.mxu0 0.0
        %503 = vmatpush1.msra.mxu0 0.0
        %504 = vmatprep.subr.mxu0 0.0
        %505 = vmatpush1.msra.mxu0 0.0
        %506 = vmatprep.subr.mxu0 0.0
        %507 = vmatpush1.msra.mxu0 0.0
        %508 = vmatprep.subr.mxu0 0.0
        %509 = vmatpush1.msra.mxu0 0.0
        %510 = vmatprep.subr.mxu0 0.0
        %511 = vmatpush1.msra.mxu0 0.0
        %512 = vmatprep.subr.mxu0 0.0
        %513 = vmatpush1.msra.mxu0 0.0
        %514 = vmatprep.subr.mxu0 0.0
        %515 = vmatpush1.msra.mxu0 0.0
        %516 = vmatprep.subr.mxu0 0.0
        %517 = vmatpush1.msra.mxu0 0.0
        %518 = vmatprep.subr.mxu0 0.0
        %519 = vmatpush1.msra.mxu0 0.0
        %520 = vmatprep.subr.mxu0 0.0
        %521 = vmatpush1.msra.mxu0 0.0
        %522 = vmatprep.subr.mxu0 0.0
        %523 = vmatpush1.msra.mxu0 0.0
        %524 = vmatprep.subr.mxu0 0.0
        %525 = vmatpush1.msra.mxu0 0.0
        %526 = vmatprep.subr.mxu0 0.0
        %527 = vmatpush1.msra.mxu0 0.0
        %528 = vmatprep.subr.mxu0 0.0
        %529 = vmatpush1.msra.mxu0 0.0
        %530 = vmatprep.subr.mxu0 0.0
        %531 = vmatpush1.msra.mxu0 0.0
        %532 = vmatprep.subr.mxu0 0.0
        %533 = vmatpush1.msra.mxu0 0.0
        %534 = vmatprep.subr.mxu0 0.0
        %535 = vmatpush1.msra.mxu0 0.0
        %536 = vmatprep.subr.mxu0 0.0
        %537 = vmatpush1.msra.mxu0 0.0
        %538 = vmatprep.subr.mxu0 0.0
        %539 = vmatpush1.msra.mxu0 0.0
        %540 = vmatprep.subr.mxu0 0.0
        %541 = vmatpush1.msra.mxu0 0.0
        %542 = vmatprep.subr.mxu0 0.0
        %543 = vmatpush1.msra.mxu0 0.0
        %544 = vmatprep.subr.mxu0 0.0
        %545 = vmatpush1.msra.mxu0 0.0
        %546 = vmatprep.subr.mxu0 0.0
        %547 = vmatpush1.msra.mxu0 0.0
        %548 = vmatprep.subr.mxu0 0.0
        %549 = vmatpush1.msra.mxu0 0.0
        %550 = vmatprep.subr.mxu0 0.0
        %551 = vmatpush1.msra.mxu0 0.0
        %552 = vmatprep.subr.mxu0 0.0
        %553 = vmatpush1.msra.mxu0 0.0
        %554 = vmatprep.mubr.f32.mxu0 0.0
        %555 = vmatmul.mubr.f32.gmra.mrb[0].mxu0 %v485
        %v556 = vpop.f32.mrb[0].mxu0
        %v557 = vadd.f32 %v481, %v556
        %v558 = vpop.f32.mrb[0].mxu0
        %559 = vmatprep.mubr.f32.mxu0 0.0
        %560 = vmatmul.mubr.f32.gmra.mrb[0].mxu0 %v488
        %v561 = vpop.f32.mrb[0].mxu0
        %v562 = vadd.f32 %v481, %v561
        %v563 = vpop.f32.mrb[0].mxu0
        %564 = vdwg.mxu0
        %v565 = vmax.f32 %v557, 0.0
        %v566 = vmax.f32 %v562, 0.0
        %v567 = vld [vmem:[#allocation3] sm:$0xff]
        %v568 = vld [vmem:[#allocation3 + $0x8] sm:$0xff]
        %v569 = vld [vmem:[#allocation13] sm:$0xff]
        %v570 = vld [vmem:[#allocation13 + $0x8] sm:$0xff]
        %v571 = vld [vmem:[#allocation13 + $0x10] sm:$0xff]
        %v572 = vld [vmem:[#allocation13 + $0x18] sm:$0xff]
        %v573 = vld [vmem:[#allocation13 + $0x20] sm:$0xff]
        %v574 = vld [vmem:[#allocation13 + $0x28] sm:$0xff]
        %v575 = vld [vmem:[#allocation13 + $0x30] sm:$0xff]
        %v576 = vld [vmem:[#allocation13 + $0x38] sm:$0xff]
        %v577 = vld [vmem:[#allocation13 + $0x40] sm:$0xff]
        %v578 = vld [vmem:[#allocation13 + $0x48] sm:$0xff]
        %v579 = vld [vmem:[#allocation13 + $0x50] sm:$0xff]
        %v580 = vld [vmem:[#allocation13 + $0x58] sm:$0xff]
        %v581 = vld [vmem:[#allocation13 + $0x60] sm:$0xff]
        %v582 = vld [vmem:[#allocation13 + $0x68] sm:$0xff]
        %v583 = vld [vmem:[#allocation13 + $0x70] sm:$0xff]
        %v584 = vld [vmem:[#allocation13 + $0x78] sm:$0xff]
        %585 = vmatprep.subr.mxu0 0.0
        %586 = vmatpush1.msra.mxu0 %v569
        %587 = vmatprep.subr.mxu0 0.0
        %588 = vmatpush1.msra.mxu0 %v570
        %589 = vmatprep.subr.mxu0 0.0
        %590 = vmatpush1.msra.mxu0 %v571
        %591 = vmatprep.subr.mxu0 0.0
        %592 = vmatpush1.msra.mxu0 %v572
        %593 = vmatprep.subr.mxu0 0.0
        %594 = vmatpush1.msra.mxu0 %v573
        %595 = vmatprep.subr.mxu0 0.0
        %596 = vmatpush1.msra.mxu0 %v574
        %597 = vmatprep.subr.mxu0 0.0
        %598 = vmatpush1.msra.mxu0 %v575
        %599 = vmatprep.subr.mxu0 0.0
        %600 = vmatpush1.msra.mxu0 %v576
        %601 = vmatprep.subr.mxu0 0.0
        %602 = vmatpush1.msra.mxu0 %v577
        %603 = vmatprep.subr.mxu0 0.0
        %604 = vmatpush1.msra.mxu0 %v578
        %605 = vmatprep.subr.mxu0 0.0
        %606 = vmatpush1.msra.mxu0 %v579
        %607 = vmatprep.subr.mxu0 0.0
        %608 = vmatpush1.msra.mxu0 %v580
        %609 = vmatprep.subr.mxu0 0.0
        %610 = vmatpush1.msra.mxu0 %v581
        %611 = vmatprep.subr.mxu0 0.0
        %612 = vmatpush1.msra.mxu0 %v582
        %613 = vmatprep.subr.mxu0 0.0
        %614 = vmatpush1.msra.mxu0 %v583
        %615 = vmatprep.subr.mxu0 0.0
        %616 = vmatpush1.msra.mxu0 %v584
        %617 = vmatprep.subr.mxu0 0.0
        %618 = vmatpush1.msra.mxu0 0.0
        %619 = vmatprep.subr.mxu0 0.0
        %620 = vmatpush1.msra.mxu0 0.0
        %621 = vmatprep.subr.mxu0 0.0
        %622 = vmatpush1.msra.mxu0 0.0
        %623 = vmatprep.subr.mxu0 0.0
        %624 = vmatpush1.msra.mxu0 0.0
        %625 = vmatprep.subr.mxu0 0.0
        %626 = vmatpush1.msra.mxu0 0.0
        %627 = vmatprep.subr.mxu0 0.0
        %628 = vmatpush1.msra.mxu0 0.0
        %629 = vmatprep.subr.mxu0 0.0
        %630 = vmatpush1.msra.mxu0 0.0
        %631 = vmatprep.subr.mxu0 0.0
        %632 = vmatpush1.msra.mxu0 0.0
        %633 = vmatprep.subr.mxu0 0.0
        %634 = vmatpush1.msra.mxu0 0.0
        %635 = vmatprep.subr.mxu0 0.0
        %636 = vmatpush1.msra.mxu0 0.0
        %637 = vmatprep.subr.mxu0 0.0
        %638 = vmatpush1.msra.mxu0 0.0
        %639 = vmatprep.subr.mxu0 0.0
        %640 = vmatpush1.msra.mxu0 0.0
        %641 = vmatprep.subr.mxu0 0.0
        %642 = vmatpush1.msra.mxu0 0.0
        %643 = vmatprep.subr.mxu0 0.0
        %644 = vmatpush1.msra.mxu0 0.0
        %645 = vmatprep.subr.mxu0 0.0
        %646 = vmatpush1.msra.mxu0 0.0
        %647 = vmatprep.subr.mxu0 0.0
        %648 = vmatpush1.msra.mxu0 0.0
        %649 = vmatprep.mubr.f32.mxu0 0.0
        %650 = vmatmul.mubr.f32.gmra.mrb[0].mxu0 %v565
        %v651 = vpop.f32.mrb[0].mxu0
        %v652 = vadd.f32 0.0, %v651
        %v653 = vpop.f32.mrb[0].mxu0
        %654 = vmatprep.mubr.f32.mxu0 0.0
        %655 = vmatmul.mubr.f32.gmra.mrb[0].mxu0 %v566
        %v656 = vpop.f32.mrb[0].mxu0
        %v657 = vadd.f32 0.0, %v656
        %v658 = vpop.f32.mrb[0].mxu0
        %659 = vdwg.mxu0
        %v660 = vadd.f32 %v567, %v652
        %v661 = vadd.f32 %v568, %v657
        %662 = vst.msk [vmem:[#allocation3] sm:$0xff] %vm483, %v660
        %663 = vst.msk [vmem:[#allocation3 + $0x8] sm:$0xff] %vm483, %v661
        // Predicated region
        $region81: #{ffn_batched.1} parent=47 // pred_check
          %p664 = pneg %p413
        $region82: #{ffn_batched.1} parent=47 // pred_check_branch
          %666 = sbr.rel (%p664) target = $region84
        $region83: #{ffn_batched.1} parent=47 // pred_region
          %v667 = vld [vmem:[#allocation3] sm:$0xff]
          %v668 = vld [vmem:[#allocation3 + $0x8] sm:$0xff]
          %v669 = vld [vmem:[#allocation15] sm:$0x1]
          %v671 = vlaneseq
          %v672 = vshrl.u32 %v671, 7
          %v673 = vsub.s32 0, %v672
          %v674 = vrot.slane %v669, %v673
          %v676 = vadd.f32 %v667, %v674
          %v677 = vadd.f32 %v668, %v674
          %v678 = vld [vmem:[%s355] sm:$0xff]
          %v679 = vld [vmem:[%s355 + $0x8] sm:$0xff]
          %v680 = vadd.f32 %v678, %v676
          %v681 = vadd.f32 %v679, %v677
          %682 = vst.msk [vmem:[%s409] sm:$0xff] %vm483, %v680
          %683 = vst.msk [vmem:[%s409 + $0x8] sm:$0xff] %vm483, %v681
        $region84: #{ffn_batched.1} parent=47 // pred_fallthru
          _
        %s684 = sand.u32 %s214, 1
        %s685 = scalar_lea.sflag [#allocation6], %s684
        %s686 = sand.u32 %s214, 1
        %s687 = smul.addr %s686, 16
        %s688 = scalar_lea.vmem [#allocation16], %s687
        // Predicated region
        $region85: #{ffn_batched.1} parent=47 // pred_check
          %p689 = pneg %p224
        $region86: #{ffn_batched.1} parent=47 // pred_check_branch
          %691 = sbr.rel (%p689) target = $region88
        $region87: #{ffn_batched.1} parent=47 // pred_region
          %s692 = smul.u32 2, %s31
          %s694 = ssub.s32 256, 256
          %695 = vsyncadd %s685, %s694
          %s696 = smul.addr %s692, 128
          %s697 = scalar_lea.hbm %s7, %s696
          %s698 = sshll.u32 %s688, 4
          %s699 = int_to_ptr.vmem [resolvable:$true] %s698
          %704 = dma.vmem_to_hbm [thread:$0]  %s699, 256, %s697, %s685, 128, 128, 8
        $region88: #{ffn_batched.1} parent=47 // pred_fallthru
          _
      $region48: #{ffn_batched.1} parent=5 // pred_fallthru
        _
      %p705 = scmp.le.s32.totalorder 2, %s22
      // Predicated region
      $region89: #{ffn_batched.1} parent=5 // pred_check
        %p706 = pneg %p705
      $region90: #{ffn_batched.1} parent=5 // pred_check_branch
        %708 = sbr.rel (%p706) target = $region92
      $region91: #{ffn_batched.1} parent=5 // pred_region
        %s709 = ssub.s32 %s22, 2
        // Predicated region
        $region93: #{ffn_batched.1} parent=91 // pred_check
          %p710 = pneg %p230
        $region94: #{ffn_batched.1} parent=91 // pred_check_branch
          %712 = sbr.rel (%p710) target = $region96
        $region95: #{ffn_batched.1} parent=91 // pred_region
          %s713 = sand.u32 %s215, 1
          %s714 = scalar_lea.sflag [#allocation6], %s713
          %s715 = sand.u32 %s215, 1
          %s716 = smul.addr %s715, 16
          %s717 = scalar_lea.vmem [#allocation16], %s716
          %718 = dma.done %s714, 256
        $region96: #{ffn_batched.1} parent=91 // pred_fallthru
          _
      $region92: #{ffn_batched.1} parent=5 // pred_fallthru
        _
    $region6: #{ffn_batched.1} parent=1 // loop_footer
      %s26 = sadd.s32 1, %s22
    $region7: #{ffn_batched.1} parent=1 // loop_footer_branch
      %21 = sbr.rel target = $region3
    $region8: #{ffn_batched.1} parent=1 // loop_exit
      _
    %719 = vsyncpa [#allocation5], 1
    %s720 = scalar_lea.sflag [#allocation5], 1
    %721 = vsyncpa %s720, 1
    %722 = vsyncpa [#allocation8], 1
    %723 = vsyncpa [#allocation11], 1
    %724 = vsyncpa [#allocation14], 1
    %725 = vsyncpa [#allocation6], 1
    %s726 = scalar_lea.sflag [#allocation6], 1
    %727 = vsyncpa %s726, 1

</llo_original>
